<compile_context>
chip_gen: v6e
topology: v6e:2x2x1
jax: 0.10.0
libtpu: 0.0.40
codegen_flags: <defaults>
</compile_context>

<pallas_src>
import functools

import jax
import jax.numpy as jnp
from jax import lax
from jax.experimental import pallas as pl
from jax.experimental.pallas import tpu as pltpu


def _round_up(x, m):
    return (x + m - 1) // m * m


def _vmem_limit_bytes():
    # get_tpu_info() may report per-chip capacity on multi-TC parts; clamp to a
    # single TensorCore's 64 MiB (v7x) and keep 25% headroom.
    try:
        cap = int(pltpu.get_tpu_info().vmem_capacity_bytes)
    except Exception:
        cap = 64 * 1024 * 1024
    return (min(cap, 64 * 1024 * 1024) * 3) // 4


# -----------------------------------------------------------------------------
# Pass 1: one conv output depth-plane per (n, d); kd is a 3-step reduction axis.
# -----------------------------------------------------------------------------
def _conv_plane_kernel(x_ref, w_ref, mask_ref, y_ref, stats_ref, acc_ref, *,
                       tap_offsets, mt, cin_pad, per_tap):
    # x_ref:     (1, 1, cin_pad, hw_ext) bf16  padded input depth plane d+kd
    # w_ref:     (1, Cout, 9*cin_pad)    bf16  weights for this kd
    # mask_ref:  (1, mt)                 f32   1.0 at valid (h<H2, w<W2) lattice cols
    # y_ref:     (1, 1, Cout, mt)        bf16  conv output plane (lane dense)
    # stats_ref: (1, 1, Cout, 2)         f32   masked [sum, sumsq] for this plane
    # acc_ref:   (Cout, mt)              f32   scratch accumulator
    kd = pl.program_id(2)

    @pl.when(kd == 0)
    def _():
        acc_ref[...] = jnp.zeros_like(acc_ref)

    xp = x_ref[0, 0]                                      # (cin_pad, hw_ext)
    w = w_ref[0]                                          # (Cout, 9*cin_pad)
    if per_tap:
        # Deep stages: K = cin_pad is already MXU-efficient; no im2col staging.
        for i, off in enumerate(tap_offsets):
            acc_ref[...] += jnp.dot(
                w[:, i * cin_pad:(i + 1) * cin_pad], xp[:, off:off + mt],
                preferred_element_type=jnp.float32)
    else:
        # Shallow stages: fold the 9 in-plane taps into one deep-K matmul.
        col = jnp.concatenate([xp[:, off:off + mt] for off in tap_offsets],
                              axis=0)                     # (9*cin_pad, mt)
        acc_ref[...] += jnp.dot(w, col, preferred_element_type=jnp.float32)

    @pl.when(kd == pl.num_programs(2) - 1)
    def _():
        acc = acc_ref[...]
        am = jnp.where(mask_ref[...] > 0.0, acc, 0.0)     # (Cout, mt)
        y_ref[0, 0] = acc.astype(y_ref.dtype)
        stats_ref[0, 0] = jnp.concatenate(
            [jnp.sum(am, axis=1, keepdims=True),
             jnp.sum(am * acc, axis=1, keepdims=True)], axis=1)   # (Cout, 2)


# -----------------------------------------------------------------------------
# Pass 2: fused InstanceNorm apply + ReLU + crop of the padded lattice.
# -----------------------------------------------------------------------------
def _norm_relu_crop_kernel(y_ref, scale_ref, shift_ref, o_ref, *, wp, h2, w2):
    # y_ref: (1, 1, Cout, mt) bf16   scale/shift: (1, Cout, 1) f32
    # o_ref: (1, Cout, h2, w2) f32   (one output depth plane, final layout)
    y = y_ref[0, 0].astype(jnp.float32)                   # (Cout, mt)
    v = jnp.maximum(y * scale_ref[0] + shift_ref[0], 0.0)
    for h in range(h2):                                   # crop (Hp,Wp) -> (H2,W2)
        o_ref[0, :, h, :] = v[:, h * wp:h * wp + w2]


def _upsample_x2_align_corners(x, axes):
    """Separable 2x linear upsample, PyTorch align_corners=True semantics."""
    def up1(v, axis):
        n_in = v.shape[axis]
        n_out = 2 * n_in
        if n_in == 1:
            return jnp.repeat(v, n_out, axis=axis)
        pos = jnp.arange(n_out, dtype=jnp.float32) * (n_in - 1) / (n_out - 1)
        lo = jnp.floor(pos).astype(jnp.int32)
        hi = jnp.minimum(lo + 1, n_in - 1)
        frac = (pos - lo.astype(jnp.float32)).astype(v.dtype)
        bshape = [1] * v.ndim
        bshape[axis] = n_out
        frac = frac.reshape(bshape)
        return jnp.take(v, lo, axis=axis) * (1 - frac) + jnp.take(v, hi, axis=axis) * frac

    for ax in axes:
        x = up1(x, ax)
    return x


@jax.jit
def unet_upsample_forward(x_ncdhw, weight, bias, gamma, beta):
    """x: (N,Cin,D,H,W), weight: (Cout,Cin,3,3,3), bias/gamma/beta: (Cout,).
    Returns (N, Cout, 2D, 2H, 2W) float32."""
    del bias  # Cancelled exactly by InstanceNorm's mean subtraction (pre-affine).

    N, Cin, D, H, W = x_ncdhw.shape
    Cout = weight.shape[0]
    D2, H2, W2 = 2 * D, 2 * H, 2 * W
    Dp, Hp, Wp = D2 + 2, H2 + 2, W2 + 2
    hw = Hp * Wp
    mt = _round_up(hw, 128)                    # conv-lattice columns per plane
    hw_ext = _round_up(mt + 2 * Wp + 2, 128)   # plane row + in-plane tap halo (zeros)
    cin_pad = _round_up(Cin, 16)

    # ---- prologue (plain JAX): transpose the SMALL tensor, upsample in bf16,
    # pad once into lane-dense (N, Dp, cin_pad, hw_ext).
    # TODO(synk): fuse the upsample gather into the conv plane load.
    x_t = jnp.transpose(x_ncdhw.astype(jnp.bfloat16), (0, 2, 1, 3, 4))   # (N,D,Cin,H,W)
    x_up = _upsample_x2_align_corners(x_t, axes=(1, 3, 4))               # (N,D2,Cin,H2,W2)
    xp = jnp.pad(x_up, ((0, 0), (1, 1), (0, cin_pad - Cin), (1, 1), (1, 1)))
    xp = xp.reshape(N, Dp, cin_pad, hw)
    xp = jnp.pad(xp, ((0, 0), (0, 0), (0, 0), (0, hw_ext - hw)))

    # Weights -> (3(kd), Cout, 9*cin_pad) bf16, tap-major / channel-minor.
    w_p = jnp.pad(weight, ((0, 0), (0, cin_pad - Cin), (0, 0), (0, 0), (0, 0)))
    w2 = jnp.transpose(w_p, (2, 0, 3, 4, 1)).reshape(3, Cout, 9 * cin_pad)
    w2 = w2.astype(jnp.bfloat16)

    # Valid-column mask over the padded (Hp, Wp) lattice, computed once here.
    lane = jnp.arange(mt, dtype=jnp.int32)
    mask = (((lane % Wp) < W2) & ((lane // Wp) < H2)).astype(jnp.float32)[None, :]

    tap_offsets = tuple(kh * Wp + kw for kh in range(3) for kw in range(3))
    per_tap = cin_pad >= 128
    vmem_limit = _vmem_limit_bytes()

    kernel1 = functools.partial(_conv_plane_kernel, tap_offsets=tap_offsets,
                                mt=mt, cin_pad=cin_pad, per_tap=per_tap)
    flops = 2 * N * D2 * Cout * 27 * cin_pad * mt
    bytes_accessed = int(3 * N * D2 * cin_pad * hw_ext * 2      # x (each plane read 3x)
                         + N * D2 * 3 * Cout * 9 * cin_pad * 2  # w (re-streamed)
                         + N * D2 * Cout * mt * 2               # y (bf16)
                         + N * D2 * Cout * 2 * 4 + mt * 4)

    conv_y, stats = pl.pallas_call(
        kernel1,
        grid=(N, D2, 3),
        in_specs=[
            pl.BlockSpec((1, 1, cin_pad, hw_ext), lambda n, d, kd: (n, d + kd, 0, 0)),
            pl.BlockSpec((1, Cout, 9 * cin_pad), lambda n, d, kd: (kd, 0, 0)),
            pl.BlockSpec((1, mt), lambda n, d, kd: (0, 0)),
        ],
        out_specs=[
            pl.BlockSpec((1, 1, Cout, mt), lambda n, d, kd: (n, d, 0, 0)),
            pl.BlockSpec((1, 1, Cout, 2), lambda n, d, kd: (n, d, 0, 0)),
        ],
        out_shape=[
            jax.ShapeDtypeStruct((N, D2, Cout, mt), jnp.bfloat16),
            jax.ShapeDtypeStruct((N, D2, Cout, 2), jnp.float32),
        ],
        scratch_shapes=[pltpu.VMEM((Cout, mt), jnp.float32)],
        compiler_params=pltpu.CompilerParams(
            dimension_semantics=("parallel", "parallel", "arbitrary"),
            vmem_limit_bytes=vmem_limit),
        cost_estimate=pl.CostEstimate(
            flops=flops, transcendentals=0, bytes_accessed=bytes_accessed),
    )(xp, w2, mask)

    # ---- tiny cross-plane InstanceNorm reduction (Chan combine, plain JAX) ----
    cnt = float(H2 * W2)                                  # valid voxels per plane
    s1 = stats[..., 0]                                    # (N, D2, Cout)
    s2 = stats[..., 1]
    mu_p = s1 / cnt
    m2_p = jnp.maximum(s2 - s1 * mu_p, 0.0)               # per-plane sum sq deviations
    mean = jnp.sum(s1, axis=1) / (cnt * D2)               # (N, Cout)
    m2 = jnp.sum(m2_p + cnt * (mu_p - mean[:, None, :]) ** 2, axis=1)
    var = jnp.maximum(m2 / (cnt * D2), 0.0)
    scale = (gamma[None, :] * lax.rsqrt(var + 1e-5)).astype(jnp.float32)
    shift = (beta[None, :] - mean * scale).astype(jnp.float32)
    scale = scale[:, :, None]                             # (N, Cout, 1)
    shift = shift[:, :, None]

    kernel2 = functools.partial(_norm_relu_crop_kernel, wp=Wp, h2=H2, w2=W2)
    out = pl.pallas_call(
        kernel2,
        grid=(N, D2),
        in_specs=[
            pl.BlockSpec((1, 1, Cout, mt), lambda n, d: (n, d, 0, 0)),
            pl.BlockSpec((1, Cout, 1), lambda n, d: (n, 0, 0)),
            pl.BlockSpec((1, Cout, 1), lambda n, d: (n, 0, 0)),
        ],
        out_specs=pl.BlockSpec((1, Cout, H2, W2), lambda n, d: (n, 0, d, 0)),
        out_shape=jax.ShapeDtypeStruct((N, Cout, D2 * H2, W2), jnp.float32),
        compiler_params=pltpu.CompilerParams(
            dimension_semantics=("parallel", "parallel"),
            vmem_limit_bytes=vmem_limit),
    )(conv_y, scale, shift)

    # Contiguous split of the last-but-one axis: metadata-only reshape.
    return out.reshape(N, Cout, D2, H2, W2)


def _reference_forward(x, weight, bias, gamma, beta):
    """Plain-JAX reference (same bf16 upsample / bf16-rounded conv operands)."""
    x_up = _upsample_x2_align_corners(x.astype(jnp.bfloat16), axes=(2, 3, 4))
    x_up = x_up.astype(jnp.float32)
    w = weight.astype(jnp.bfloat16).astype(jnp.float32)
    y = lax.conv_general_dilated(
        x_up, w, window_strides=(1, 1, 1), padding=((1, 1),) * 3,
        dimension_numbers=("NCDHW", "OIDHW", "NCDHW"))
    y = y + bias[None, :, None, None, None]
    mean = jnp.mean(y, axis=(2, 3, 4), keepdims=True)
    var = jnp.mean((y - mean) ** 2, axis=(2, 3, 4), keepdims=True)
    y = (y - mean) * lax.rsqrt(var + 1e-5)
    y = y * gamma[None, :, None, None, None] + beta[None, :, None, None, None]
    return jnp.maximum(y, 0.0)


if __name__ == "__main__":
    key = jax.random.PRNGKey(0)
    k_x, k_w, k_b = jax.random.split(key, 3)

    N, Cin, Cout = 2, 4, 8
    D = H = W = 4   # upsampled to 8x8x8 inside the forward pass

    x = jax.random.normal(k_x, (N, Cin, D, H, W), dtype=jnp.float32)
    fan_in = Cin * 27
    weight = jax.random.normal(k_w, (Cout, Cin, 3, 3, 3), dtype=jnp.float32) / jnp.sqrt(fan_in)
    bias = 0.01 * jax.random.normal(k_b, (Cout,), dtype=jnp.float32)
    gamma = jnp.ones((Cout,), dtype=jnp.float32)   # InstanceNorm3d affine default init
    beta = jnp.zeros((Cout,), dtype=jnp.float32)

    out = jax.block_until_ready(unet_upsample_forward(x, weight, bias, gamma, beta))
    assert out.shape == (N, Cout, 2 * D, 2 * H, 2 * W), out.shape

    ref = jax.block_until_ready(_reference_forward(x, weight, bias, gamma, beta))
    max_err = float(jnp.max(jnp.abs(out - ref)))
    assert jnp.allclose(out, ref, atol=5e-3, rtol=5e-3), max_err

    print("KERNEL_OK")
</pallas_src>

<mosaic_0001>
module attributes {stable_mosaic.version = 11 : i64} {
  func.func @_conv_plane_kernel(%arg0: i32, %arg1: i32, %arg2: i32, %arg3: memref<1x1x16x256xbf16, #tpu.memory_space<vmem>>, %arg4: memref<1x8x144xbf16, #tpu.memory_space<vmem>>, %arg5: memref<1x128xf32, #tpu.memory_space<vmem>>, %arg6: memref<1x1x8x128xbf16, #tpu.memory_space<vmem>>, %arg7: memref<1x1x8x2xf32, #tpu.memory_space<vmem>>, %arg8: memref<8x128xf32, #tpu.memory_space<vmem>>) attributes {dimension_semantics = [#tpu.dimension_semantics<parallel>, #tpu.dimension_semantics<parallel>, #tpu.dimension_semantics<arbitrary>], iteration_bounds = array<i64: 2, 8, 3>, scalar_prefetch = 0 : i64, scratch_operands = 1 : i64, tpu.core_type = #tpu.core_type<tc>, window_params = [{transform_indices = @transform_0, window_bounds = array<i64: 1, 1, 16, 256>}, {transform_indices = @transform_1, window_bounds = array<i64: 1, 8, 144>}, {pipeline_mode = #tpu.pipeline_mode<synchronous>, transform_indices = @transform_2, window_bounds = array<i64: 1, 128>}, {transform_indices = @transform_3, window_bounds = array<i64: 1, 1, 8, 128>}, {transform_indices = @transform_4, window_bounds = array<i64: 1, 1, 8, 2>}]} {
    %c0_i32 = arith.constant 0 : i32
    %0 = arith.cmpi eq, %arg2, %c0_i32 : i32
    %1 = arith.extui %0 : i1 to i32
    %c0_i32_0 = arith.constant 0 : i32
    %2 = arith.cmpi ne, %1, %c0_i32_0 : i32
    scf.if %2 {
      %cst_12 = arith.constant 0.000000e+00 : f32
      %24 = vector.broadcast %cst_12 : f32 to vector<8x128xf32>
      %c0_13 = arith.constant 0 : index
      %c0_14 = arith.constant 0 : index
      %25 = vector.load %arg8[%c0_13, %c0_14] : memref<8x128xf32, #tpu.memory_space<vmem>>, vector<8x128xf32>
      tpu.vector_store %arg8[%c0_13, %c0_14], %24 {strides = array<i32>} : memref<8x128xf32, #tpu.memory_space<vmem>>, vector<8x128xf32>,
    } else {
    }
    %c0 = arith.constant 0 : index
    %c0_1 = arith.constant 0 : index
    %c0_2 = arith.constant 0 : index
    %c0_3 = arith.constant 0 : index
    %3 = vector.load %arg3[%c0, %c0_1, %c0_2, %c0_3] : memref<1x1x16x256xbf16, #tpu.memory_space<vmem>>, vector<1x1x16x256xbf16>
    %4 = vector.shape_cast %3 : vector<1x1x16x256xbf16> to vector<16x256xbf16>
    %c0_4 = arith.constant 0 : index
    %c0_5 = arith.constant 0 : index
    %c0_6 = arith.constant 0 : index
    %5 = vector.load %arg4[%c0_4, %c0_5, %c0_6] : memref<1x8x144xbf16, #tpu.memory_space<vmem>>, vector<1x8x144xbf16>
    %6 = vector.shape_cast %5 : vector<1x8x144xbf16> to vector<8x144xbf16>
    %7 = vector.extract_strided_slice %4 {offsets = [0, 0], sizes = [16, 128], strides = [1, 1]} : vector<16x256xbf16> to vector<16x128xbf16>
    %8 = vector.extract_strided_slice %4 {offsets = [0, 1], sizes = [16, 128], strides = [1, 1]} : vector<16x256xbf16> to vector<16x128xbf16>
    %9 = vector.extract_strided_slice %4 {offsets = [0, 2], sizes = [16, 128], strides = [1, 1]} : vector<16x256xbf16> to vector<16x128xbf16>
    %10 = vector.extract_strided_slice %4 {offsets = [0, 10], sizes = [16, 128], strides = [1, 1]} : vector<16x256xbf16> to vector<16x128xbf16>
    %11 = vector.extract_strided_slice %4 {offsets = [0, 11], sizes = [16, 128], strides = [1, 1]} : vector<16x256xbf16> to vector<16x128xbf16>
    %12 = vector.extract_strided_slice %4 {offsets = [0, 12], sizes = [16, 128], strides = [1, 1]} : vector<16x256xbf16> to vector<16x128xbf16>
    %13 = vector.extract_strided_slice %4 {offsets = [0, 20], sizes = [16, 128], strides = [1, 1]} : vector<16x256xbf16> to vector<16x128xbf16>
    %14 = vector.extract_strided_slice %4 {offsets = [0, 21], sizes = [16, 128], strides = [1, 1]} : vector<16x256xbf16> to vector<16x128xbf16>
    %15 = vector.extract_strided_slice %4 {offsets = [0, 22], sizes = [16, 128], strides = [1, 1]} : vector<16x256xbf16> to vector<16x128xbf16>
    %16 = tpu.concatenate %7, %8, %9, %10, %11, %12, %13, %14, %15 in 0 : vector<16x128xbf16>, vector<16x128xbf16>, vector<16x128xbf16>, vector<16x128xbf16>, vector<16x128xbf16>, vector<16x128xbf16>, vector<16x128xbf16>, vector<16x128xbf16>, vector<16x128xbf16> -> vector<144x128xbf16>
    %c0_7 = arith.constant 0 : index
    %c0_8 = arith.constant 0 : index
    %17 = vector.load %arg8[%c0_7, %c0_8] : memref<8x128xf32, #tpu.memory_space<vmem>>, vector<8x128xf32>
    %cst = arith.constant dense<0.000000e+00> : vector<8x128xf32>
    %18 = tpu.matmul %6, %16, %cst {dimension_numbers = #tpu.dot_dimension_numbers<[1], [0], [0], [1], [0, 0, 1, 1], [], []>} : vector<8x144xbf16>, vector<144x128xbf16>, vector<8x128xf32> -> vector<8x128xf32>
    %19 = arith.addf %17, %18 : vector<8x128xf32>
    %c0_9 = arith.constant 0 : index
    %c0_10 = arith.constant 0 : index
    %20 = vector.load %arg8[%c0_9, %c0_10] : memref<8x128xf32, #tpu.memory_space<vmem>>, vector<8x128xf32>
    tpu.vector_store %arg8[%c0_9, %c0_10], %19 {strides = array<i32>} : memref<8x128xf32, #tpu.memory_space<vmem>>, vector<8x128xf32>,
    %c2_i32 = arith.constant 2 : i32
    %21 = arith.cmpi eq, %arg2, %c2_i32 : i32
    %22 = arith.extui %21 : i1 to i32
    %c0_i32_11 = arith.constant 0 : i32
    %23 = arith.cmpi ne, %22, %c0_i32_11 : i32
    scf.if %23 {
      %c0_12 = arith.constant 0 : index
      %c0_13 = arith.constant 0 : index
      %24 = vector.load %arg8[%c0_12, %c0_13] : memref<8x128xf32, #tpu.memory_space<vmem>>, vector<8x128xf32>
      %c0_14 = arith.constant 0 : index
      %c0_15 = arith.constant 0 : index
      %25 = vector.load %arg5[%c0_14, %c0_15] : memref<1x128xf32, #tpu.memory_space<vmem>>, vector<1x128xf32>
      %cst_16 = arith.constant 0.000000e+00 : f32
      %26 = vector.broadcast %cst_16 : f32 to vector<1x128xf32>
      %27 = arith.cmpf ogt, %25, %26 : vector<1x128xf32>
      %cst_17 = arith.constant 0.000000e+00 : f32
      %28 = vector.shape_cast %27 : vector<1x128xi1> to vector<1x128xi1>
      %29 = vector.broadcast %28 : vector<1x128xi1> to vector<8x128xi1>
      %30 = vector.broadcast %cst_17 : f32 to vector<8x128xf32>
      %31 = arith.select %29, %24, %30 : vector<8x128xi1>, vector<8x128xf32>
      %32 = arith.truncf %24 : vector<8x128xf32> to vector<8x128xbf16>
      %c0_18 = arith.constant 0 : index
      %c0_19 = arith.constant 0 : index
      %c0_20 = arith.constant 0 : index
      %c0_21 = arith.constant 0 : index
      %33 = vector.load %arg6[%c0_18, %c0_19, %c0_20, %c0_21] : memref<1x1x8x128xbf16, #tpu.memory_space<vmem>>, vector<1x1x8x128xbf16>
      %34 = vector.shape_cast %33 : vector<1x1x8x128xbf16> to vector<8x128xbf16>
      %35 = vector.shape_cast %32 : vector<8x128xbf16> to vector<1x1x8x128xbf16>
      tpu.vector_store %arg6[%c0_18, %c0_19, %c0_20, %c0_21], %35 {strides = array<i32>} : memref<1x1x8x128xbf16, #tpu.memory_space<vmem>>, vector<1x1x8x128xbf16>,
      %cst_22 = arith.constant dense<0.000000e+00> : vector<8xf32>
      %36 = vector.multi_reduction <add>, %31, %cst_22 [1] : vector<8x128xf32> to vector<8xf32>
      %37 = vector.shape_cast %36 : vector<8xf32> to vector<8x1xf32>
      %38 = arith.mulf %31, %24 : vector<8x128xf32>
      %cst_23 = arith.constant dense<0.000000e+00> : vector<8xf32>
      %39 = vector.multi_reduction <add>, %38, %cst_23 [1] : vector<8x128xf32> to vector<8xf32>
      %40 = vector.shape_cast %39 : vector<8xf32> to vector<8x1xf32>
      %41 = tpu.concatenate %37, %40 in 1 : vector<8x1xf32>, vector<8x1xf32> -> vector<8x2xf32>
      %c0_24 = arith.constant 0 : index
      %c0_25 = arith.constant 0 : index
      %c0_26 = arith.constant 0 : index
      %c0_27 = arith.constant 0 : index
      %42 = vector.load %arg7[%c0_24, %c0_25, %c0_26, %c0_27] : memref<1x1x8x2xf32, #tpu.memory_space<vmem>>, vector<1x1x8x2xf32>
      %43 = vector.shape_cast %42 : vector<1x1x8x2xf32> to vector<8x2xf32>
      %44 = vector.shape_cast %41 : vector<8x2xf32> to vector<1x1x8x2xf32>
      tpu.vector_store %arg7[%c0_24, %c0_25, %c0_26, %c0_27], %44 {strides = array<i32>} : memref<1x1x8x2xf32, #tpu.memory_space<vmem>>, vector<1x1x8x2xf32>,
    } else {
    }
    return
  }
  func.func @transform_0(%arg0: i32, %arg1: i32, %arg2: i32) -> (i32, i32, i32, i32) {
    %0 = arith.addi %arg1, %arg2 : i32
    %c0_i32 = arith.constant 0 : i32
    %c0_i32_0 = arith.constant 0 : i32
    %c0_i32_1 = arith.constant 0 : i32
    return %arg0, %0, %c0_i32, %c0_i32_0 : i32, i32, i32, i32
  }
  func.func @transform_1(%arg0: i32, %arg1: i32, %arg2: i32) -> (i32, i32, i32) {
    %c0_i32 = arith.constant 0 : i32
    %c0_i32_0 = arith.constant 0 : i32
    %c0_i32_1 = arith.constant 0 : i32
    return %arg2, %c0_i32, %c0_i32_0 : i32, i32, i32
  }
  func.func @transform_2(%arg0: i32, %arg1: i32, %arg2: i32) -> (i32, i32) {
    %c0_i32 = arith.constant 0 : i32
    %c0_i32_0 = arith.constant 0 : i32
    %c0_i32_1 = arith.constant 0 : i32
    return %c0_i32, %c0_i32_0 : i32, i32
  }
  func.func @transform_3(%arg0: i32, %arg1: i32, %arg2: i32) -> (i32, i32, i32, i32) {
    %c0_i32 = arith.constant 0 : i32
    %c0_i32_0 = arith.constant 0 : i32
    %c0_i32_1 = arith.constant 0 : i32
    return %arg0, %arg1, %c0_i32, %c0_i32_0 : i32, i32, i32, i32
  }
  func.func @transform_4(%arg0: i32, %arg1: i32, %arg2: i32) -> (i32, i32, i32, i32) {
    %c0_i32 = arith.constant 0 : i32
    %c0_i32_0 = arith.constant 0 : i32
    %c0_i32_1 = arith.constant 0 : i32
    return %arg0, %arg1, %c0_i32, %c0_i32_0 : i32, i32, i32, i32
  }
}

module attributes {stable_mosaic.version = 11 : i64} {
  func.func @_norm_relu_crop_kernel(%arg0: i32, %arg1: i32, %arg2: memref<1x1x8x128xbf16, #tpu.memory_space<vmem>>, %arg3: memref<1x8x1xf32, #tpu.memory_space<vmem>>, %arg4: memref<1x8x1xf32, #tpu.memory_space<vmem>>, %arg5: memref<1x8x8x8xf32, #tpu.memory_space<vmem>>) attributes {dimension_semantics = [#tpu.dimension_semantics<parallel>, #tpu.dimension_semantics<parallel>], iteration_bounds = array<i64: 2, 8>, scalar_prefetch = 0 : i64, scratch_operands = 0 : i64, tpu.core_type = #tpu.core_type<tc>, window_params = [{transform_indices = @transform_0, window_bounds = array<i64: 1, 1, 8, 128>}, {transform_indices = @transform_1, window_bounds = array<i64: 1, 8, 1>}, {transform_indices = @transform_2, window_bounds = array<i64: 1, 8, 1>}, {transform_indices = @transform_3, window_bounds = array<i64: 1, 8, 8, 8>}]} {
    %c0 = arith.constant 0 : index
    %c0_0 = arith.constant 0 : index
    %c0_1 = arith.constant 0 : index
    %c0_2 = arith.constant 0 : index
    %0 = vector.load %arg2[%c0, %c0_0, %c0_1, %c0_2] : memref<1x1x8x128xbf16, #tpu.memory_space<vmem>>, vector<1x1x8x128xbf16>
    %1 = vector.shape_cast %0 : vector<1x1x8x128xbf16> to vector<8x128xbf16>
    %2 = arith.extf %1 : vector<8x128xbf16> to vector<8x128xf32>
    %c0_3 = arith.constant 0 : index
    %c0_4 = arith.constant 0 : index
    %c0_5 = arith.constant 0 : index
    %3 = vector.load %arg3[%c0_3, %c0_4, %c0_5] : memref<1x8x1xf32, #tpu.memory_space<vmem>>, vector<1x8x1xf32>
    %4 = vector.shape_cast %3 : vector<1x8x1xf32> to vector<8x1xf32>
    %5 = vector.broadcast %4 : vector<8x1xf32> to vector<8x128xf32>
    %6 = arith.mulf %2, %5 : vector<8x128xf32>
    %c0_6 = arith.constant 0 : index
    %c0_7 = arith.constant 0 : index
    %c0_8 = arith.constant 0 : index
    %7 = vector.load %arg4[%c0_6, %c0_7, %c0_8] : memref<1x8x1xf32, #tpu.memory_space<vmem>>, vector<1x8x1xf32>
    %8 = vector.shape_cast %7 : vector<1x8x1xf32> to vector<8x1xf32>
    %9 = vector.broadcast %8 : vector<8x1xf32> to vector<8x128xf32>
    %10 = arith.addf %6, %9 : vector<8x128xf32>
    %cst = arith.constant 0.000000e+00 : f32
    %11 = vector.broadcast %cst : f32 to vector<8x128xf32>
    %12 = arith.maximumf %10, %11 : vector<8x128xf32>
    %13 = vector.extract_strided_slice %12 {offsets = [0, 0], sizes = [8, 8], strides = [1, 1]} : vector<8x128xf32> to vector<8x8xf32>
    %c0_9 = arith.constant 0 : index
    %c0_10 = arith.constant 0 : index
    %c0_11 = arith.constant 0 : index
    %c0_12 = arith.constant 0 : index
    %14 = vector.load %arg5[%c0_9, %c0_10, %c0_11, %c0_12] : memref<1x8x8x8xf32, #tpu.memory_space<vmem>>, vector<1x8x1x8xf32>
    %15 = vector.shape_cast %14 : vector<1x8x1x8xf32> to vector<8x8xf32>
    %16 = vector.shape_cast %13 : vector<8x8xf32> to vector<1x8x1x8xf32>
    tpu.vector_store %arg5[%c0_9, %c0_10, %c0_11, %c0_12], %16 {strides = array<i32>} : memref<1x8x8x8xf32, #tpu.memory_space<vmem>>, vector<1x8x1x8xf32>,
    %17 = vector.extract_strided_slice %12 {offsets = [0, 10], sizes = [8, 8], strides = [1, 1]} : vector<8x128xf32> to vector<8x8xf32>
    %c0_13 = arith.constant 0 : index
    %c0_14 = arith.constant 0 : index
    %c1 = arith.constant 1 : index
    %c0_15 = arith.constant 0 : index
    %18 = vector.load %arg5[%c0_13, %c0_14, %c1, %c0_15] : memref<1x8x8x8xf32, #tpu.memory_space<vmem>>, vector<1x8x1x8xf32>
    %19 = vector.shape_cast %18 : vector<1x8x1x8xf32> to vector<8x8xf32>
    %20 = vector.shape_cast %17 : vector<8x8xf32> to vector<1x8x1x8xf32>
    tpu.vector_store %arg5[%c0_13, %c0_14, %c1, %c0_15], %20 {strides = array<i32>} : memref<1x8x8x8xf32, #tpu.memory_space<vmem>>, vector<1x8x1x8xf32>,
    %21 = vector.extract_strided_slice %12 {offsets = [0, 20], sizes = [8, 8], strides = [1, 1]} : vector<8x128xf32> to vector<8x8xf32>
    %c0_16 = arith.constant 0 : index
    %c0_17 = arith.constant 0 : index
    %c2 = arith.constant 2 : index
    %c0_18 = arith.constant 0 : index
    %22 = vector.load %arg5[%c0_16, %c0_17, %c2, %c0_18] : memref<1x8x8x8xf32, #tpu.memory_space<vmem>>, vector<1x8x1x8xf32>
    %23 = vector.shape_cast %22 : vector<1x8x1x8xf32> to vector<8x8xf32>
    %24 = vector.shape_cast %21 : vector<8x8xf32> to vector<1x8x1x8xf32>
    tpu.vector_store %arg5[%c0_16, %c0_17, %c2, %c0_18], %24 {strides = array<i32>} : memref<1x8x8x8xf32, #tpu.memory_space<vmem>>, vector<1x8x1x8xf32>,
    %25 = vector.extract_strided_slice %12 {offsets = [0, 30], sizes = [8, 8], strides = [1, 1]} : vector<8x128xf32> to vector<8x8xf32>
    %c0_19 = arith.constant 0 : index
    %c0_20 = arith.constant 0 : index
    %c3 = arith.constant 3 : index
    %c0_21 = arith.constant 0 : index
    %26 = vector.load %arg5[%c0_19, %c0_20, %c3, %c0_21] : memref<1x8x8x8xf32, #tpu.memory_space<vmem>>, vector<1x8x1x8xf32>
    %27 = vector.shape_cast %26 : vector<1x8x1x8xf32> to vector<8x8xf32>
    %28 = vector.shape_cast %25 : vector<8x8xf32> to vector<1x8x1x8xf32>
    tpu.vector_store %arg5[%c0_19, %c0_20, %c3, %c0_21], %28 {strides = array<i32>} : memref<1x8x8x8xf32, #tpu.memory_space<vmem>>, vector<1x8x1x8xf32>,
    %29 = vector.extract_strided_slice %12 {offsets = [0, 40], sizes = [8, 8], strides = [1, 1]} : vector<8x128xf32> to vector<8x8xf32>
    %c0_22 = arith.constant 0 : index
    %c0_23 = arith.constant 0 : index
    %c4 = arith.constant 4 : index
    %c0_24 = arith.constant 0 : index
    %30 = vector.load %arg5[%c0_22, %c0_23, %c4, %c0_24] : memref<1x8x8x8xf32, #tpu.memory_space<vmem>>, vector<1x8x1x8xf32>
    %31 = vector.shape_cast %30 : vector<1x8x1x8xf32> to vector<8x8xf32>
    %32 = vector.shape_cast %29 : vector<8x8xf32> to vector<1x8x1x8xf32>
    tpu.vector_store %arg5[%c0_22, %c0_23, %c4, %c0_24], %32 {strides = array<i32>} : memref<1x8x8x8xf32, #tpu.memory_space<vmem>>, vector<1x8x1x8xf32>,
    %33 = vector.extract_strided_slice %12 {offsets = [0, 50], sizes = [8, 8], strides = [1, 1]} : vector<8x128xf32> to vector<8x8xf32>
    %c0_25 = arith.constant 0 : index
    %c0_26 = arith.constant 0 : index
    %c5 = arith.constant 5 : index
    %c0_27 = arith.constant 0 : index
    %34 = vector.load %arg5[%c0_25, %c0_26, %c5, %c0_27] : memref<1x8x8x8xf32, #tpu.memory_space<vmem>>, vector<1x8x1x8xf32>
    %35 = vector.shape_cast %34 : vector<1x8x1x8xf32> to vector<8x8xf32>
    %36 = vector.shape_cast %33 : vector<8x8xf32> to vector<1x8x1x8xf32>
    tpu.vector_store %arg5[%c0_25, %c0_26, %c5, %c0_27], %36 {strides = array<i32>} : memref<1x8x8x8xf32, #tpu.memory_space<vmem>>, vector<1x8x1x8xf32>,
    %37 = vector.extract_strided_slice %12 {offsets = [0, 60], sizes = [8, 8], strides = [1, 1]} : vector<8x128xf32> to vector<8x8xf32>
    %c0_28 = arith.constant 0 : index
    %c0_29 = arith.constant 0 : index
    %c6 = arith.constant 6 : index
    %c0_30 = arith.constant 0 : index
    %38 = vector.load %arg5[%c0_28, %c0_29, %c6, %c0_30] : memref<1x8x8x8xf32, #tpu.memory_space<vmem>>, vector<1x8x1x8xf32>
    %39 = vector.shape_cast %38 : vector<1x8x1x8xf32> to vector<8x8xf32>
    %40 = vector.shape_cast %37 : vector<8x8xf32> to vector<1x8x1x8xf32>
    tpu.vector_store %arg5[%c0_28, %c0_29, %c6, %c0_30], %40 {strides = array<i32>} : memref<1x8x8x8xf32, #tpu.memory_space<vmem>>, vector<1x8x1x8xf32>,
    %41 = vector.extract_strided_slice %12 {offsets = [0, 70], sizes = [8, 8], strides = [1, 1]} : vector<8x128xf32> to vector<8x8xf32>
    %c0_31 = arith.constant 0 : index
    %c0_32 = arith.constant 0 : index
    %c7 = arith.constant 7 : index
    %c0_33 = arith.constant 0 : index
    %42 = vector.load %arg5[%c0_31, %c0_32, %c7, %c0_33] : memref<1x8x8x8xf32, #tpu.memory_space<vmem>>, vector<1x8x1x8xf32>
    %43 = vector.shape_cast %42 : vector<1x8x1x8xf32> to vector<8x8xf32>
    %44 = vector.shape_cast %41 : vector<8x8xf32> to vector<1x8x1x8xf32>
    tpu.vector_store %arg5[%c0_31, %c0_32, %c7, %c0_33], %44 {strides = array<i32>} : memref<1x8x8x8xf32, #tpu.memory_space<vmem>>, vector<1x8x1x8xf32>,
    return
  }
  func.func @transform_0(%arg0: i32, %arg1: i32) -> (i32, i32, i32, i32) {
    %c0_i32 = arith.constant 0 : i32
    %c0_i32_0 = arith.constant 0 : i32
    %c0_i32_1 = arith.constant 0 : i32
    return %arg0, %arg1, %c0_i32, %c0_i32_0 : i32, i32, i32, i32
  }
  func.func @transform_1(%arg0: i32, %arg1: i32) -> (i32, i32, i32) {
    %c0_i32 = arith.constant 0 : i32
    %c0_i32_0 = arith.constant 0 : i32
    %c0_i32_1 = arith.constant 0 : i32
    return %arg0, %c0_i32, %c0_i32_0 : i32, i32, i32
  }
  func.func @transform_2(%arg0: i32, %arg1: i32) -> (i32, i32, i32) {
    %c0_i32 = arith.constant 0 : i32
    %c0_i32_0 = arith.constant 0 : i32
    %c0_i32_1 = arith.constant 0 : i32
    return %arg0, %c0_i32, %c0_i32_0 : i32, i32, i32
  }
  func.func @transform_3(%arg0: i32, %arg1: i32) -> (i32, i32, i32, i32) {
    %c0_i32 = arith.constant 0 : i32
    %c0_i32_0 = arith.constant 0 : i32
    %c0_i32_1 = arith.constant 0 : i32
    return %arg0, %c0_i32, %arg1, %c0_i32_0 : i32, i32, i32, i32
  }
}

</mosaic_0001>

<llo_original>
// kernel: unet_upsample_forward.2
$region0: #{unet_upsample_forward.2}
  #allocation0 [shape = 'u32[]', space=smem, size = 0x4, offset = 0x4, fixed_abs, tag = 'smem constant byte address 0x4 - core index']
  #allocation1 [shape = 'u32[144,128]{1,0:T(1,128)}', space=vmem, size = 0x12000, scoped, tag = 'internal scratch']
  #allocation2 [shape = 'f32[8,128]{1,0:T(8,128)}', space=vmem, size = 0x1000, scoped, tag = 'scratch operand']
  %s0 = inlined_call_operand.vmem [shape: bf16[2,10,16,256], index: 0, kind: input, shape index: {}]
  %s1 = inlined_call_operand.vmem [shape: bf16[3,8,144], index: 1, kind: input, shape index: {}]
  %s2 = inlined_call_operand.vmem [shape: f32[1,128], index: 2, kind: input, shape index: {}]
  %s3 = inlined_call_operand.vmem [shape: bf16[2,8,8,128], index: 3, kind: output, shape index: {0}]
  %s4 = inlined_call_operand.vmem [shape: f32[2,8,8,2], index: 4, kind: output, shape index: {1}]
  %5 = xla_tuple %s3, %s4
  %s6 = sld [smem:[#allocation0]]
  $region61: #{unet_upsample_forward.2} parent=0
    _
  %s8 = ssub.s32 1, %s6
  %s9 = scalar_select 0, %s8, %s6
  loop: start=0, step=1, limit=50
  $region2: #{unet_upsample_forward.2} parent=0 // loop_pre_header
    _
  $region3: #{unet_upsample_forward.2} parent=0 // loop_header
    %s11 = sphi 0, %s15
    %p12 = scmp.ge.s32.totalorder %s11, 50
    %s18 = sphi 0, %s37
    %s19 = sphi 0, %s33
    %s20 = sphi 0, %s29
    %s21 = sphi 0, %s18
    %s22 = sphi 0, %s19
    %s23 = sphi 0, %s20
    %s24 = sphi 0, %s21
    %s25 = sphi 0, %s22
    %s26 = sphi 0, %s23
    %s44 = sphi 0, %s46
    %s47 = sphi 0, %s44
    %s48 = sphi 0, %s47
    %s64 = sphi 0, %s48
    %s70 = sphi 0, %s72
    %s73 = sphi 0, %s70
    %s74 = sphi 0, %s73
    %s90 = sphi 0, %s74
    %s94 = sphi 0, %s94
    %s96 = sphi 0, %s94
    %s97 = sphi 0, %s96
    %s111 = sphi 0, %s97
    %s119 = sphi 0, %s121
    %s122 = sphi 0, %s119
    %s123 = sphi 0, %s122
    %s139 = sphi 0, %s123
    %s147 = sphi 0, %s149
    %s150 = sphi 0, %s147
    %s151 = sphi 0, %s150
    %s167 = sphi 0, %s151
  $region4: #{unet_upsample_forward.2} parent=0 // loop_header_branch
    %14 = sbr.rel (%p12) target = $region8
  $region5: #{unet_upsample_forward.2} parent=0 // loop_body
    %s16 = ssub.s32 %s11, 1
    %s17 = ssub.s32 %s11, 2
    %s27 = sadd.s32 1, %s20
    %p28 = scmp.ge.s32.totalorder %s27, 3
    %s29 = scalar_select %p28, 0, %s27
    %s30 = sadd.s32 1, %s19
    %s31 = scalar_select %p28, %s30, %s19
    %p32 = scmp.ge.s32.totalorder %s31, 8
    %s33 = scalar_select %p32, 0, %s31
    %s34 = sadd.s32 1, %s18
    %s35 = scalar_select %p32, %s34, %s18
    %p36 = scmp.ge.s32.totalorder %s35, 2
    %s37 = scalar_select %p36, 0, %s35
    %s38 = sadd.s32 %s19, %s20
    %s39 = sadd.s32 %s33, %s29
    %s40 = ssub.s32 %s18, %s37
    %s41 = ssub.s32 %s38, %s39
    %s42 = sor.u32 %s40, %s41
    %p43 = scmp.eq.s32.totalorder %s42, 0
    %s45 = sadd.s32 %s44, 1
    %s46 = scalar_select %p43, %s44, %s45
    %p49 = pneg %p43
    %p50 = scmp.eq.s32.totalorder %s11, 47
    %p51 = por %p49, %p50
    %p52 = scmp.ne.s32.totalorder %s44, %s47
    %p53 = scmp.eq.s32.totalorder %s11, 0
    %p54 = por %p52, %p53
    %p55 = scmp.ne.s32.totalorder %s44, %s47
    %p56 = scmp.eq.s32.totalorder %s16, 47
    %p57 = por %p55, %p56
    %p58 = scmp.ne.s32.totalorder %s47, %s48
    %p59 = scmp.eq.s32.totalorder %s16, 0
    %p60 = por %p58, %p59
    %p61 = scmp.ne.s32.totalorder %s47, %s48
    %p62 = scmp.eq.s32.totalorder %s17, 47
    %p63 = por %p61, %p62
    %p65 = scmp.ne.s32.totalorder %s48, %s64
    %p66 = scmp.eq.s32.totalorder %s17, 0
    %p67 = por %p65, %p66
    %s68 = ssub.s32 %s20, %s29
    %p69 = scmp.eq.s32.totalorder %s68, 0
    %s71 = sadd.s32 %s70, 1
    %s72 = scalar_select %p69, %s70, %s71
    %p75 = pneg %p69
    %p76 = scmp.eq.s32.totalorder %s11, 47
    %p77 = por %p75, %p76
    %p78 = scmp.ne.s32.totalorder %s70, %s73
    %p79 = scmp.eq.s32.totalorder %s11, 0
    %p80 = por %p78, %p79
    %p81 = scmp.ne.s32.totalorder %s70, %s73
    %p82 = scmp.eq.s32.totalorder %s16, 47
    %p83 = por %p81, %p82
    %p84 = scmp.ne.s32.totalorder %s73, %s74
    %p85 = scmp.eq.s32.totalorder %s16, 0
    %p86 = por %p84, %p85
    %p87 = scmp.ne.s32.totalorder %s73, %s74
    %p88 = scmp.eq.s32.totalorder %s17, 47
    %p89 = por %p87, %p88
    %p91 = scmp.ne.s32.totalorder %s74, %s90
    %p92 = scmp.eq.s32.totalorder %s17, 0
    %p93 = por %p91, %p92
    %s95 = sadd.s32 %s94, 1
    %p98 = scmp.eq.s32.totalorder %s11, 47
    %p99 = scmp.ne.s32.totalorder %s94, %s96
    %p100 = scmp.eq.s32.totalorder %s11, 0
    %p101 = por %p99, %p100
    %p102 = scmp.ne.s32.totalorder %s94, %s96
    %p103 = scmp.eq.s32.totalorder %s16, 47
    %p104 = por %p102, %p103
    %p105 = scmp.ne.s32.totalorder %s96, %s97
    %p106 = scmp.eq.s32.totalorder %s16, 0
    %p107 = por %p105, %p106
    %p108 = scmp.ne.s32.totalorder %s96, %s97
    %p109 = scmp.eq.s32.totalorder %s17, 47
    %p110 = por %p108, %p109
    %p112 = scmp.ne.s32.totalorder %s97, %s111
    %p113 = scmp.eq.s32.totalorder %s17, 0
    %p114 = por %p112, %p113
    %s115 = ssub.s32 %s18, %s37
    %s116 = ssub.s32 %s19, %s33
    %s117 = sor.u32 %s115, %s116
    %p118 = scmp.eq.s32.totalorder %s117, 0
    %s120 = sadd.s32 %s119, 1
    %s121 = scalar_select %p118, %s119, %s120
    %p124 = pneg %p118
    %p125 = scmp.eq.s32.totalorder %s11, 47
    %p126 = por %p124, %p125
    %p127 = scmp.ne.s32.totalorder %s119, %s122
    %p128 = scmp.eq.s32.totalorder %s11, 0
    %p129 = por %p127, %p128
    %p130 = scmp.ne.s32.totalorder %s119, %s122
    %p131 = scmp.eq.s32.totalorder %s16, 47
    %p132 = por %p130, %p131
    %p133 = scmp.ne.s32.totalorder %s122, %s123
    %p134 = scmp.eq.s32.totalorder %s16, 0
    %p135 = por %p133, %p134
    %p136 = scmp.ne.s32.totalorder %s122, %s123
    %p137 = scmp.eq.s32.totalorder %s17, 47
    %p138 = por %p136, %p137
    %p140 = scmp.ne.s32.totalorder %s123, %s139
    %p141 = scmp.eq.s32.totalorder %s17, 0
    %p142 = por %p140, %p141
    %s143 = ssub.s32 %s18, %s37
    %s144 = ssub.s32 %s19, %s33
    %s145 = sor.u32 %s143, %s144
    %p146 = scmp.eq.s32.totalorder %s145, 0
    %s148 = sadd.s32 %s147, 1
    %s149 = scalar_select %p146, %s147, %s148
    %p152 = pneg %p146
    %p153 = scmp.eq.s32.totalorder %s11, 47
    %p154 = por %p152, %p153
    %p155 = scmp.ne.s32.totalorder %s147, %s150
    %p156 = scmp.eq.s32.totalorder %s11, 0
    %p157 = por %p155, %p156
    %p158 = scmp.ne.s32.totalorder %s147, %s150
    %p159 = scmp.eq.s32.totalorder %s16, 47
    %p160 = por %p158, %p159
    %p161 = scmp.ne.s32.totalorder %s150, %s151
    %p162 = scmp.eq.s32.totalorder %s16, 0
    %p163 = por %p161, %p162
    %p164 = scmp.ne.s32.totalorder %s150, %s151
    %p165 = scmp.eq.s32.totalorder %s17, 47
    %p166 = por %p164, %p165
    %p168 = scmp.ne.s32.totalorder %s151, %s167
    %p169 = scmp.eq.s32.totalorder %s17, 0
    %p170 = por %p168, %p169
    %p171 = scmp.le.s32.totalorder 1, %s11
    %p172 = scmp.lt.s32.totalorder %s11, 49
    %p173 = pnand %p171, %p172
    %p174 = pneg %p173
    // Predicated region
    $region9: #{unet_upsample_forward.2} parent=5 // pred_check
      _
    $region10: #{unet_upsample_forward.2} parent=5 // pred_check_branch
      %176 = sbr.rel (%p173) target = $region12
    $region11: #{unet_upsample_forward.2} parent=5 // pred_region
      %s177 = ssub.s32 %s11, 1
      // Predicated region
      $region13: #{unet_upsample_forward.2} parent=11 // pred_check
        %p178 = pneg %p107
      $region14: #{unet_upsample_forward.2} parent=11 // pred_check_branch
        %180 = sbr.rel (%p178) target = $region16
      $region15: #{unet_upsample_forward.2} parent=11 // pred_region
        _
      $region16: #{unet_upsample_forward.2} parent=11 // pred_fallthru
        _
    $region12: #{unet_upsample_forward.2} parent=5 // pred_fallthru
      _
    %p181 = scmp.lt.s32.totalorder %s11, 48
    // Predicated region
    $region17: #{unet_upsample_forward.2} parent=5 // pred_check
      %p182 = pneg %p181
    $region18: #{unet_upsample_forward.2} parent=5 // pred_check_branch
      %184 = sbr.rel (%p182) target = $region20
    $region19: #{unet_upsample_forward.2} parent=5 // pred_region
      // Predicated region
      $region21: #{unet_upsample_forward.2} parent=19 // pred_check
        %p185 = pneg %p54
      $region22: #{unet_upsample_forward.2} parent=19 // pred_check_branch
        %187 = sbr.rel (%p185) target = $region24
      $region23: #{unet_upsample_forward.2} parent=19 // pred_region
        %s188 = sadd.s32 %s19, %s20
        %p189 = scmp.lt.s32.totalorder %s18, 1
        %s190 = scalar_select %p189, %s18, 1
        %p191 = scmp.lt.s32.totalorder %s188, 9
        %s192 = scalar_select %p191, %s188, 9
        %s193 = smul.addr %s192, 4
        %s194 = smul.addr %s190, 40
        %s195 = sadd.s32 %s193, %s194
        %s196 = smul.addr %s195, 4
        %s197 = scalar_lea.vmem %s0, %s196
        %s198 = sadd.s32 %s19, %s20
      $region24: #{unet_upsample_forward.2} parent=19 // pred_fallthru
        _
      // Predicated region
      $region25: #{unet_upsample_forward.2} parent=19 // pred_check
        %p199 = pneg %p80
      $region26: #{unet_upsample_forward.2} parent=19 // pred_check_branch
        %201 = sbr.rel (%p199) target = $region28
      $region27: #{unet_upsample_forward.2} parent=19 // pred_region
        %p202 = scmp.lt.s32.totalorder %s20, 2
        %s203 = scalar_select %p202, %s20, 2
        %s204 = smul.addr %s203, 2
        %s205 = smul.addr %s204, 4
        %s206 = scalar_lea.vmem %s1, %s205
      $region28: #{unet_upsample_forward.2} parent=19 // pred_fallthru
        _
    $region20: #{unet_upsample_forward.2} parent=5 // pred_fallthru
      _
    %p207 = scmp.le.s32.totalorder 1, %s11
    %p208 = scmp.lt.s32.totalorder %s11, 49
    %p209 = pnand %p207, %p208
    %p210 = pneg %p209
    // Predicated region
    $region29: #{unet_upsample_forward.2} parent=5 // pred_check
      _
    $region30: #{unet_upsample_forward.2} parent=5 // pred_check_branch
      %212 = sbr.rel (%p209) target = $region32
    $region31: #{unet_upsample_forward.2} parent=5 // pred_region
      %s213 = ssub.s32 %s11, 1
      %s214 = sadd.s32 %s22, %s23
      %p215 = scmp.lt.s32.totalorder %s21, 1
      %s216 = scalar_select %p215, %s21, 1
      %p217 = scmp.lt.s32.totalorder %s214, 9
      %s218 = scalar_select %p217, %s214, 9
      %s219 = smul.addr %s218, 4
      %s220 = smul.addr %s216, 40
      %s221 = sadd.s32 %s219, %s220
      %s222 = smul.addr %s221, 4
      %s223 = scalar_lea.vmem %s0, %s222
      %p224 = pneg %p60
      %p225 = pneg %p57
      %p226 = scmp.lt.s32.totalorder %s23, 2
      %s227 = scalar_select %p226, %s23, 2
      %s228 = smul.addr %s227, 2
      %s229 = smul.addr %s228, 4
      %s230 = scalar_lea.vmem %s1, %s229
      %p231 = pneg %p86
      %p232 = pneg %p83
      %p233 = pneg %p107
      %p234 = pneg %p104
      %p235 = pneg %p135
      %p236 = pneg %p132
      %p237 = scmp.lt.s32.totalorder %s21, 1
      %s238 = scalar_select %p237, %s21, 1
      %p239 = scmp.lt.s32.totalorder %s22, 7
      %s240 = scalar_select %p239, %s22, 7
      %s241 = smul.addr %s238, 8
      %s242 = sadd.s32 %s240, %s241
      %s243 = smul.addr %s242, 4
      %s244 = scalar_lea.vmem %s3, %s243
      %p245 = pneg %p163
      %p246 = pneg %p160
      %p247 = scmp.lt.s32.totalorder %s21, 1
      %s248 = scalar_select %p247, %s21, 1
      %p249 = scmp.lt.s32.totalorder %s22, 7
      %s250 = scalar_select %p249, %s22, 7
      %s251 = smul.addr %s248, 8
      %s252 = sadd.s32 %s250, %s251
      %s253 = smul.addr %s252, 8
      %s254 = scalar_lea.vmem %s4, %s253
      %s255 = sadd.s32 %s22, %s23
      %p256 = scmp.lt.s32.totalorder %s21, 1
      %s257 = scalar_select %p256, %s21, 1
      %p258 = scmp.lt.s32.totalorder %s255, 9
      %s259 = scalar_select %p258, %s255, 9
      %s260 = smul.addr %s259, 4
      %s261 = smul.addr %s257, 40
      %s262 = sadd.s32 %s260, %s261
      %s263 = smul.addr %s262, 4
      %s264 = scalar_lea.vmem %s0, %s263
      %s265 = sadd.s32 %s22, %s23
      %p266 = scmp.lt.s32.totalorder %s23, 2
      %s267 = scalar_select %p266, %s23, 2
      %s268 = smul.addr %s267, 2
      %s269 = smul.addr %s268, 4
      %s270 = scalar_lea.vmem %s1, %s269
      %p271 = scmp.lt.s32.totalorder %s21, 1
      %s272 = scalar_select %p271, %s21, 1
      %p273 = scmp.lt.s32.totalorder %s22, 7
      %s274 = scalar_select %p273, %s22, 7
      %s275 = smul.addr %s272, 8
      %s276 = sadd.s32 %s274, %s275
      %s277 = smul.addr %s276, 4
      %s278 = scalar_lea.vmem %s3, %s277
      %p279 = scmp.lt.s32.totalorder %s21, 1
      %s280 = scalar_select %p279, %s21, 1
      %p281 = scmp.lt.s32.totalorder %s22, 7
      %s282 = scalar_select %p281, %s22, 7
      %s283 = smul.addr %s280, 8
      %s284 = sadd.s32 %s282, %s283
      %s285 = smul.addr %s284, 8
      %s286 = scalar_lea.vmem %s4, %s285
      %p288 = scmp.eq.s32.totalorder %s23, 0
      // Predicated region
      $region33: #{unet_upsample_forward.2} parent=31 // pred_check
        %p289 = pneg %p288
      $region34: #{unet_upsample_forward.2} parent=31 // pred_check_branch
        %291 = sbr.rel (%p289) target = $region36
      $region35: #{unet_upsample_forward.2} parent=31 // pred_region
        %292 = vst [vmem:[#allocation2] sm:$0xff] 0.0
      $region36: #{unet_upsample_forward.2} parent=31 // pred_fallthru
        _
      %v293 = vld [vmem:[%s264] sm:$0xff]
      %v294 = vld [vmem:[%s264 + $0x8] sm:$0xff]
      %v295 = vld [vmem:[%s270] sm:$0xff]
      %v298 = vunpack.c.l.b16 %v293
      %v299 = vunpack.c.l.b16 %v294
      %v300 = vpack.c.b16 %v299, %v298
      %v302 = vunpack.c.h.b16 %v293
      %v303 = vunpack.c.h.b16 %v294
      %v304 = vpack.c.b16 %v303, %v302
      %305 = vrot.lane.b32.xlu0 %v300, 127
      %v306 = vpop.permute.xlu0 %305
      %307 = vrot.lane.b32.xlu0 %v304, 127
      %v308 = vpop.permute.xlu0 %307
      %vm309 = vcmask 1039360
      %v310 = vsel %vm309, %v306, %v308
      %312 = vrot.lane.b32.xlu0 %v300, 126
      %v313 = vpop.permute.xlu0 %312
      %314 = vrot.lane.b32.xlu0 %v304, 126
      %v315 = vpop.permute.xlu0 %314
      %vm316 = vcmask 1031168
      %v317 = vsel %vm316, %v313, %v315
      %319 = vrot.lane.b32.xlu0 %v300, 118
      %v320 = vpop.permute.xlu0 %319
      %321 = vrot.lane.b32.xlu0 %v304, 118
      %v322 = vpop.permute.xlu0 %321
      %vm323 = vcmask 965632
      %v324 = vsel %vm323, %v320, %v322
      %326 = vrot.lane.b32.xlu0 %v300, 117
      %v327 = vpop.permute.xlu0 %326
      %328 = vrot.lane.b32.xlu0 %v304, 117
      %v329 = vpop.permute.xlu0 %328
      %vm330 = vcmask 957440
      %v331 = vsel %vm330, %v327, %v329
      %333 = vrot.lane.b32.xlu0 %v300, 116
      %v334 = vpop.permute.xlu0 %333
      %335 = vrot.lane.b32.xlu0 %v304, 116
      %v336 = vpop.permute.xlu0 %335
      %vm337 = vcmask 949248
      %v338 = vsel %vm337, %v334, %v336
      %340 = vrot.lane.b32.xlu0 %v300, 108
      %v341 = vpop.permute.xlu0 %340
      %342 = vrot.lane.b32.xlu0 %v304, 108
      %v343 = vpop.permute.xlu0 %342
      %vm344 = vcmask 883712
      %v345 = vsel %vm344, %v341, %v343
      %347 = vrot.lane.b32.xlu0 %v300, 107
      %v348 = vpop.permute.xlu0 %347
      %349 = vrot.lane.b32.xlu0 %v304, 107
      %v350 = vpop.permute.xlu0 %349
      %vm351 = vcmask 875520
      %v352 = vsel %vm351, %v348, %v350
      %354 = vrot.lane.b32.xlu0 %v300, 106
      %v355 = vpop.permute.xlu0 %354
      %356 = vrot.lane.b32.xlu0 %v304, 106
      %v357 = vpop.permute.xlu0 %356
      %vm358 = vcmask 867328
      %v359 = vsel %vm358, %v355, %v357
      %v361 = vld [vmem:[#allocation2] sm:$0xff]
      %v363 = vunpack.c.l.b16 %v295
      %v364 = vunpack.c.h.b16 %v295
      %v365 = vpack.c.b16 %v363, %v363
      %v366 = vpack.c.b16 %v364, %v364
      %vm368 = vcmask 130048
      %v370 = vsel %vm368, %v366, 0
      %372 = vmatprep.subr.bf16.mxu0 0
      %373 = vmatpush1.bf16.msra.mxu0 %v352
      %374 = vmatprep.subr.bf16.mxu0 0
      %375 = vmatpush1.bf16.msra.mxu0 %v345
      %376 = vmatprep.subr.bf16.mxu0 0
      %377 = vmatpush1.bf16.msra.mxu0 %v338
      %378 = vmatprep.subr.bf16.mxu0 0
      %379 = vmatpush1.bf16.msra.mxu0 %v331
      %380 = vmatprep.subr.bf16.mxu0 0
      %381 = vmatpush1.bf16.msra.mxu0 %v324
      %382 = vmatprep.subr.bf16.mxu0 0
      %383 = vmatpush1.bf16.msra.mxu0 %v317
      %384 = vmatprep.subr.bf16.mxu0 0
      %385 = vmatpush1.bf16.msra.mxu0 %v310
      %386 = vmatprep.subr.bf16.mxu0 0
      %387 = vmatpush1.bf16.msra.mxu0 %v300
      %388 = vmatprep.subr.bf16.mxu0 0
      %389 = vmatpush2.bf16.msra.mxu0 0
      %390 = vmatprep.subr.bf16.mxu0 0
      %391 = vmatpush2.bf16.msra.mxu0 0
      %392 = vmatprep.subr.bf16.mxu0 0
      %393 = vmatpush2.bf16.msra.mxu0 0
      %394 = vmatprep.subr.bf16.mxu0 0
      %395 = vmatpush2.bf16.msra.mxu0 0
      %396 = vmatprep.subr.bf16.mxu0 0
      %397 = vmatpush2.bf16.msra.mxu0 0
      %398 = vmatprep.subr.bf16.mxu0 0
      %399 = vmatpush2.bf16.msra.mxu0 0
      %400 = vmatprep.subr.bf16.mxu0 0
      %401 = vmatpush2.bf16.msra.mxu0 0
      %402 = vmatprep.subr.bf16.mxu0 0
      %403 = vmatpush2.bf16.msra.mxu0 %v359
      %404 = vmatprep.mubr.bf16.mxu0 %v370
      %405 = vmatmul.mubr.bf16.gmra.mxu0 %v365
      %v406 = vpop.f32.mrf.mxu0
      %v407 = vadd.f32 0.0, %v406
      %v408 = vpop.f32.mrf.mxu0
      %v409 = vpop.f32.mrf.mxu0
      %v410 = vpop.f32.mrf.mxu0
      %411 = vdwg.mxu0
      %v412 = vadd.f32 %v361, %v407
      %413 = vst [vmem:[#allocation2] sm:$0xff] %v412
      %p414 = scmp.eq.s32.totalorder %s23, 2
      // Predicated region
      $region37: #{unet_upsample_forward.2} parent=31 // pred_check
        %p415 = pneg %p414
      $region38: #{unet_upsample_forward.2} parent=31 // pred_check_branch
        %417 = sbr.rel (%p415) target = $region40
      $region39: #{unet_upsample_forward.2} parent=31 // pred_region
        %v418 = vld [vmem:[#allocation2] sm:$0xff]
        %v419 = vld [vmem:[%s2] sm:$0x1]
        %vm420 = vcmp.gt.f32.partialorder %v419, 0.0
        %v421 = vsel %vm420, 1, 0
        %v422 = vlaneseq
        %v423 = vshrl.u32 %v422, 7
        %v424 = vsub.s32 0, %v423
        %v425 = vrot.slane %v421, %v424
        %vm426 = vcmp.eq.s32.totalorder %v425, 1
        %v427 = vsel %vm426, %v418, 0.0
        %v428 = vpack.c.bf16 %v418, %v418
        %429 = vst [vmem:[%s278] sm:$0xf] %v428
        %430 = vadd.xlane.f32.xlu0 %v427
        %v431 = vpop.xlane.xlu0 %430
        %v432 = vmul.f32 %v427, %v418
        %433 = vadd.xlane.f32.xlu0 %v432
        %v434 = vpop.xlane.xlu0 %433
        %vm435 = vcmask 7168
        %v436 = vsel %vm435, %v431, %v434
        %vm437 = vcmask 15360
        %438 = vst.msk [vmem:[%s286] sm:$0xff] %vm437, %v436
      $region40: #{unet_upsample_forward.2} parent=31 // pred_fallthru
        _
      %p439 = scmp.lt.s32.totalorder %s21, 1
      %s440 = scalar_select %p439, %s21, 1
      %p441 = scmp.lt.s32.totalorder %s22, 7
      %s442 = scalar_select %p441, %s22, 7
      %s443 = smul.addr %s440, 8
      %s444 = sadd.s32 %s442, %s443
      %s445 = smul.addr %s444, 4
      %s446 = scalar_lea.vmem %s3, %s445
      %p447 = scmp.lt.s32.totalorder %s21, 1
      %s448 = scalar_select %p447, %s21, 1
      %p449 = scmp.lt.s32.totalorder %s22, 7
      %s450 = scalar_select %p449, %s22, 7
      %s451 = smul.addr %s448, 8
      %s452 = sadd.s32 %s450, %s451
      %s453 = smul.addr %s452, 8
      %s454 = scalar_lea.vmem %s4, %s453
      // Predicated region
      $region41: #{unet_upsample_forward.2} parent=31 // pred_check
        %p455 = pneg %p132
      $region42: #{unet_upsample_forward.2} parent=31 // pred_check_branch
        %457 = sbr.rel (%p455) target = $region44
      $region43: #{unet_upsample_forward.2} parent=31 // pred_region
        _
      $region44: #{unet_upsample_forward.2} parent=31 // pred_fallthru
        _
      // Predicated region
      $region45: #{unet_upsample_forward.2} parent=31 // pred_check
        %p458 = pneg %p160
      $region46: #{unet_upsample_forward.2} parent=31 // pred_check_branch
        %460 = sbr.rel (%p458) target = $region48
      $region47: #{unet_upsample_forward.2} parent=31 // pred_region
        _
      $region48: #{unet_upsample_forward.2} parent=31 // pred_fallthru
        _
    $region32: #{unet_upsample_forward.2} parent=5 // pred_fallthru
      _
    %p461 = scmp.le.s32.totalorder 2, %s11
    // Predicated region
    $region49: #{unet_upsample_forward.2} parent=5 // pred_check
      %p462 = pneg %p461
    $region50: #{unet_upsample_forward.2} parent=5 // pred_check_branch
      %464 = sbr.rel (%p462) target = $region52
    $region51: #{unet_upsample_forward.2} parent=5 // pred_region
      %s465 = ssub.s32 %s11, 2
      // Predicated region
      $region53: #{unet_upsample_forward.2} parent=51 // pred_check
        %p466 = pneg %p138
      $region54: #{unet_upsample_forward.2} parent=51 // pred_check_branch
        %468 = sbr.rel (%p466) target = $region56
      $region55: #{unet_upsample_forward.2} parent=51 // pred_region
        %p469 = scmp.lt.s32.totalorder %s24, 1
        %s470 = scalar_select %p469, %s24, 1
        %p471 = scmp.lt.s32.totalorder %s25, 7
        %s472 = scalar_select %p471, %s25, 7
        %s473 = smul.addr %s470, 8
        %s474 = sadd.s32 %s472, %s473
        %s475 = smul.addr %s474, 4
        %s476 = scalar_lea.vmem %s3, %s475
      $region56: #{unet_upsample_forward.2} parent=51 // pred_fallthru
        _
      // Predicated region
      $region57: #{unet_upsample_forward.2} parent=51 // pred_check
        %p477 = pneg %p166
      $region58: #{unet_upsample_forward.2} parent=51 // pred_check_branch
        %479 = sbr.rel (%p477) target = $region60
      $region59: #{unet_upsample_forward.2} parent=51 // pred_region
        %p480 = scmp.lt.s32.totalorder %s24, 1
        %s481 = scalar_select %p480, %s24, 1
        %p482 = scmp.lt.s32.totalorder %s25, 7
        %s483 = scalar_select %p482, %s25, 7
        %s484 = smul.addr %s481, 8
        %s485 = sadd.s32 %s483, %s484
        %s486 = smul.addr %s485, 8
        %s487 = scalar_lea.vmem %s4, %s486
      $region60: #{unet_upsample_forward.2} parent=51 // pred_fallthru
        _
    $region52: #{unet_upsample_forward.2} parent=5 // pred_fallthru
      _
  $region6: #{unet_upsample_forward.2} parent=0 // loop_footer
    %s15 = sadd.s32 1, %s11
  $region7: #{unet_upsample_forward.2} parent=0 // loop_footer_branch
    %10 = sbr.rel target = $region3
  $region8: #{unet_upsample_forward.2} parent=0 // loop_exit
    _

// kernel: unet_upsample_forward.3
$region0: #{unet_upsample_forward.3}
  #allocation0 [shape = 'u32[]', space=smem, size = 0x4, offset = 0x4, fixed_abs, tag = 'smem constant byte address 0x4 - core index']
  #allocation1 [shape = 'u32[144,128]{1,0:T(1,128)}', space=vmem, size = 0x12000, scoped, tag = 'internal scratch']
  %s0 = inlined_call_operand.vmem [shape: bf16[2,8,8,128], index: 0, kind: input, shape index: {}]
  %s1 = inlined_call_operand.vmem [shape: f32[2,8,1], index: 1, kind: input, shape index: {}]
  %s2 = inlined_call_operand.vmem [shape: f32[2,8,1], index: 2, kind: input, shape index: {}]
  %s3 = inlined_call_operand.hbm [shape: f32[2,8,64,8], index: 3, kind: output, shape index: {}]
  %s4 = sld [smem:[#allocation0]]
  $region45: #{unet_upsample_forward.3} parent=0
    _
  %s6 = ssub.s32 1, %s4
  %s7 = scalar_select 0, %s6, %s4
  $region1: #{unet_upsample_forward.3} parent=0
    #allocation2 [shape = 'u8[65536]{0}', space=vmem, size = 0x10000, scoped, tag = 'output window, operand 0']
    #allocation3 [shape = 's32[2]{0}', space=sflag, size = 0x8, scoped, tag = 'scoped memory for unet_upsample_forward.3']
    %8 = vsyncpa [#allocation3], 0
    %s9 = scalar_lea.sflag [#allocation3], 1
    %10 = vsyncpa %s9, 0
    loop: start=0, step=1, limit=18
    $region2: #{unet_upsample_forward.3} parent=1 // loop_pre_header
      _
    $region3: #{unet_upsample_forward.3} parent=1 // loop_header
      %s12 = sphi 0, %s16
      %p13 = scmp.ge.s32.totalorder %s12, 18
      %s19 = sphi 0, %s31
      %s20 = sphi 0, %s27
      %s21 = sphi 0, %s19
      %s22 = sphi 0, %s20
      %s23 = sphi 0, %s21
      %s24 = sphi 0, %s22
      %s36 = sphi 0, %s38
      %s39 = sphi 0, %s36
      %s40 = sphi 0, %s39
      %s56 = sphi 0, %s40
      %s62 = sphi 0, %s64
      %s65 = sphi 0, %s62
      %s66 = sphi 0, %s65
      %s82 = sphi 0, %s66
      %s88 = sphi 0, %s90
      %s91 = sphi 0, %s88
      %s92 = sphi 0, %s91
      %s108 = sphi 0, %s92
      %s116 = sphi 0, %s118
      %s119 = sphi 0, %s116
      %s120 = sphi 0, %s119
      %s136 = sphi 0, %s120
    $region4: #{unet_upsample_forward.3} parent=1 // loop_header_branch
      %15 = sbr.rel (%p13) target = $region8
    $region5: #{unet_upsample_forward.3} parent=1 // loop_body
      %s17 = ssub.s32 %s12, 1
      %s18 = ssub.s32 %s12, 2
      %s25 = sadd.s32 1, %s20
      %p26 = scmp.ge.s32.totalorder %s25, 8
      %s27 = scalar_select %p26, 0, %s25
      %s28 = sadd.s32 1, %s19
      %s29 = scalar_select %p26, %s28, %s19
      %p30 = scmp.ge.s32.totalorder %s29, 2
      %s31 = scalar_select %p30, 0, %s29
      %s32 = ssub.s32 %s19, %s31
      %s33 = ssub.s32 %s20, %s27
      %s34 = sor.u32 %s32, %s33
      %p35 = scmp.eq.s32.totalorder %s34, 0
      %s37 = sadd.s32 %s36, 1
      %s38 = scalar_select %p35, %s36, %s37
      %p41 = pneg %p35
      %p42 = scmp.eq.s32.totalorder %s12, 15
      %p43 = por %p41, %p42
      %p44 = scmp.ne.s32.totalorder %s36, %s39
      %p45 = scmp.eq.s32.totalorder %s12, 0
      %p46 = por %p44, %p45
      %p47 = scmp.ne.s32.totalorder %s36, %s39
      %p48 = scmp.eq.s32.totalorder %s17, 15
      %p49 = por %p47, %p48
      %p50 = scmp.ne.s32.totalorder %s39, %s40
      %p51 = scmp.eq.s32.totalorder %s17, 0
      %p52 = por %p50, %p51
      %p53 = scmp.ne.s32.totalorder %s39, %s40
      %p54 = scmp.eq.s32.totalorder %s18, 15
      %p55 = por %p53, %p54
      %p57 = scmp.ne.s32.totalorder %s40, %s56
      %p58 = scmp.eq.s32.totalorder %s18, 0
      %p59 = por %p57, %p58
      %s60 = ssub.s32 %s19, %s31
      %p61 = scmp.eq.s32.totalorder %s60, 0
      %s63 = sadd.s32 %s62, 1
      %s64 = scalar_select %p61, %s62, %s63
      %p67 = pneg %p61
      %p68 = scmp.eq.s32.totalorder %s12, 15
      %p69 = por %p67, %p68
      %p70 = scmp.ne.s32.totalorder %s62, %s65
      %p71 = scmp.eq.s32.totalorder %s12, 0
      %p72 = por %p70, %p71
      %p73 = scmp.ne.s32.totalorder %s62, %s65
      %p74 = scmp.eq.s32.totalorder %s17, 15
      %p75 = por %p73, %p74
      %p76 = scmp.ne.s32.totalorder %s65, %s66
      %p77 = scmp.eq.s32.totalorder %s17, 0
      %p78 = por %p76, %p77
      %p79 = scmp.ne.s32.totalorder %s65, %s66
      %p80 = scmp.eq.s32.totalorder %s18, 15
      %p81 = por %p79, %p80
      %p83 = scmp.ne.s32.totalorder %s66, %s82
      %p84 = scmp.eq.s32.totalorder %s18, 0
      %p85 = por %p83, %p84
      %s86 = ssub.s32 %s19, %s31
      %p87 = scmp.eq.s32.totalorder %s86, 0
      %s89 = sadd.s32 %s88, 1
      %s90 = scalar_select %p87, %s88, %s89
      %p93 = pneg %p87
      %p94 = scmp.eq.s32.totalorder %s12, 15
      %p95 = por %p93, %p94
      %p96 = scmp.ne.s32.totalorder %s88, %s91
      %p97 = scmp.eq.s32.totalorder %s12, 0
      %p98 = por %p96, %p97
      %p99 = scmp.ne.s32.totalorder %s88, %s91
      %p100 = scmp.eq.s32.totalorder %s17, 15
      %p101 = por %p99, %p100
      %p102 = scmp.ne.s32.totalorder %s91, %s92
      %p103 = scmp.eq.s32.totalorder %s17, 0
      %p104 = por %p102, %p103
      %p105 = scmp.ne.s32.totalorder %s91, %s92
      %p106 = scmp.eq.s32.totalorder %s18, 15
      %p107 = por %p105, %p106
      %p109 = scmp.ne.s32.totalorder %s92, %s108
      %p110 = scmp.eq.s32.totalorder %s18, 0
      %p111 = por %p109, %p110
      %s112 = ssub.s32 %s19, %s31
      %s113 = ssub.s32 %s20, %s27
      %s114 = sor.u32 %s112, %s113
      %p115 = scmp.eq.s32.totalorder %s114, 0
      %s117 = sadd.s32 %s116, 1
      %s118 = scalar_select %p115, %s116, %s117
      %p121 = pneg %p115
      %p122 = scmp.eq.s32.totalorder %s12, 15
      %p123 = por %p121, %p122
      %p124 = scmp.ne.s32.totalorder %s116, %s119
      %p125 = scmp.eq.s32.totalorder %s12, 0
      %p126 = por %p124, %p125
      %p127 = scmp.ne.s32.totalorder %s116, %s119
      %p128 = scmp.eq.s32.totalorder %s17, 15
      %p129 = por %p127, %p128
      %p130 = scmp.ne.s32.totalorder %s119, %s120
      %p131 = scmp.eq.s32.totalorder %s17, 0
      %p132 = por %p130, %p131
      %p133 = scmp.ne.s32.totalorder %s119, %s120
      %p134 = scmp.eq.s32.totalorder %s18, 15
      %p135 = por %p133, %p134
      %p137 = scmp.ne.s32.totalorder %s120, %s136
      %p138 = scmp.eq.s32.totalorder %s18, 0
      %p139 = por %p137, %p138
      %p140 = scmp.le.s32.totalorder 1, %s12
      %p141 = scmp.lt.s32.totalorder %s12, 17
      %p142 = pnand %p140, %p141
      %p143 = pneg %p142
      // Predicated region
      $region9: #{unet_upsample_forward.3} parent=5 // pred_check
        _
      $region10: #{unet_upsample_forward.3} parent=5 // pred_check_branch
        %145 = sbr.rel (%p142) target = $region12
      $region11: #{unet_upsample_forward.3} parent=5 // pred_region
        %s146 = ssub.s32 %s12, 1
      $region12: #{unet_upsample_forward.3} parent=5 // pred_fallthru
        _
      %p147 = scmp.lt.s32.totalorder %s12, 16
      // Predicated region
      $region13: #{unet_upsample_forward.3} parent=5 // pred_check
        %p148 = pneg %p147
      $region14: #{unet_upsample_forward.3} parent=5 // pred_check_branch
        %150 = sbr.rel (%p148) target = $region16
      $region15: #{unet_upsample_forward.3} parent=5 // pred_region
        // Predicated region
        $region17: #{unet_upsample_forward.3} parent=15 // pred_check
          %p151 = pneg %p46
        $region18: #{unet_upsample_forward.3} parent=15 // pred_check_branch
          %153 = sbr.rel (%p151) target = $region20
        $region19: #{unet_upsample_forward.3} parent=15 // pred_region
          %p154 = scmp.lt.s32.totalorder %s19, 1
          %s155 = scalar_select %p154, %s19, 1
          %p156 = scmp.lt.s32.totalorder %s20, 7
          %s157 = scalar_select %p156, %s20, 7
          %s158 = smul.addr %s155, 8
          %s159 = sadd.s32 %s157, %s158
          %s160 = smul.addr %s159, 4
          %s161 = scalar_lea.vmem %s0, %s160
        $region20: #{unet_upsample_forward.3} parent=15 // pred_fallthru
          _
        // Predicated region
        $region21: #{unet_upsample_forward.3} parent=15 // pred_check
          %p162 = pneg %p72
        $region22: #{unet_upsample_forward.3} parent=15 // pred_check_branch
          %164 = sbr.rel (%p162) target = $region24
        $region23: #{unet_upsample_forward.3} parent=15 // pred_region
          %p165 = scmp.lt.s32.totalorder %s19, 1
          %s166 = scalar_select %p165, %s19, 1
          %s167 = smul.addr %s166, 8
          %s168 = scalar_lea.vmem %s1, %s167
        $region24: #{unet_upsample_forward.3} parent=15 // pred_fallthru
          _
        // Predicated region
        $region25: #{unet_upsample_forward.3} parent=15 // pred_check
          %p169 = pneg %p98
        $region26: #{unet_upsample_forward.3} parent=15 // pred_check_branch
          %171 = sbr.rel (%p169) target = $region28
        $region27: #{unet_upsample_forward.3} parent=15 // pred_region
          %p172 = scmp.lt.s32.totalorder %s19, 1
          %s173 = scalar_select %p172, %s19, 1
          %s174 = smul.addr %s173, 8
          %s175 = scalar_lea.vmem %s2, %s174
        $region28: #{unet_upsample_forward.3} parent=15 // pred_fallthru
          _
      $region16: #{unet_upsample_forward.3} parent=5 // pred_fallthru
        _
      %p176 = scmp.le.s32.totalorder 1, %s12
      %p177 = scmp.lt.s32.totalorder %s12, 17
      %p178 = pnand %p176, %p177
      %p179 = pneg %p178
      // Predicated region
      $region29: #{unet_upsample_forward.3} parent=5 // pred_check
        _
      $region30: #{unet_upsample_forward.3} parent=5 // pred_check_branch
        %181 = sbr.rel (%p178) target = $region32
      $region31: #{unet_upsample_forward.3} parent=5 // pred_region
        %s182 = ssub.s32 %s12, 1
        %p183 = scmp.lt.s32.totalorder %s21, 1
        %s184 = scalar_select %p183, %s21, 1
        %p185 = scmp.lt.s32.totalorder %s22, 7
        %s186 = scalar_select %p185, %s22, 7
        %s187 = smul.addr %s184, 8
        %s188 = sadd.s32 %s186, %s187
        %s189 = smul.addr %s188, 4
        %s190 = scalar_lea.vmem %s0, %s189
        %p191 = pneg %p52
        %p192 = pneg %p49
        %p193 = scmp.lt.s32.totalorder %s21, 1
        %s194 = scalar_select %p193, %s21, 1
        %s195 = smul.addr %s194, 8
        %s196 = scalar_lea.vmem %s1, %s195
        %p197 = pneg %p78
        %p198 = pneg %p75
        %p199 = scmp.lt.s32.totalorder %s21, 1
        %s200 = scalar_select %p199, %s21, 1
        %s201 = smul.addr %s200, 8
        %s202 = scalar_lea.vmem %s2, %s201
        %p203 = pneg %p104
        %p204 = pneg %p101
        %p205 = pneg %p132
        %p206 = pneg %p129
        %s207 = sand.u32 %s119, 1
        %s208 = scalar_lea.sflag [#allocation3], %s207
        %s209 = sand.u32 %s119, 1
        %s210 = smul.addr %s209, 64
        %s211 = scalar_lea.vmem [#allocation2], %s210
        %p212 = scmp.lt.s32.totalorder %s21, 1
        %s213 = scalar_select %p212, %s21, 1
        %p214 = scmp.lt.s32.totalorder %s22, 7
        %s215 = scalar_select %p214, %s22, 7
        %s216 = smul.addr %s213, 8
        %s217 = sadd.s32 %s215, %s216
        %s218 = smul.addr %s217, 4
        %s219 = scalar_lea.vmem %s0, %s218
        %p220 = scmp.lt.s32.totalorder %s21, 1
        %s221 = scalar_select %p220, %s21, 1
        %s222 = smul.addr %s221, 8
        %s223 = scalar_lea.vmem %s1, %s222
        %p224 = scmp.lt.s32.totalorder %s21, 1
        %s225 = scalar_select %p224, %s21, 1
        %s226 = smul.addr %s225, 8
        %s227 = scalar_lea.vmem %s2, %s226
        %v228 = vld [vmem:[%s219] sm:$0xf]
        %v229 = vunpack.c.l.bf16 %v228
        %v230 = vld [vmem:[%s223] sm:$0xff]
        %232 = vset.pattern.permute.xlu0 0
        %233 = vperm.xlu0 %232, %v230
        %v234 = vpop.permute.xlu0 %233
        %v236 = vmul.f32 %v229, %v234
        %v237 = vld [vmem:[%s227] sm:$0xff]
        %239 = vset.pattern.permute.xlu0 0
        %240 = vperm.xlu0 %239, %v237
        %v241 = vpop.permute.xlu0 %240
        %v243 = vadd.f32 %v236, %v241
        %v244 = vmax.f32 %v243, 0.0
        %v246 = vcombine.high %v244, %v244
        %v248 = vunpack.c.l.s4 1966171168
        %v249 = vunpack.c.0.s8 %v248
        %v250 = vlaneseq
        %v251 = vshrl.u32 %v250, 7
        %v252 = vsub.s32 %v249, %v251
        %v253 = vrot.slane %v244, %v252
        %v255 = vunpack.c.l.s4 1966171168
        %v256 = vunpack.c.0.s8 %v255
        %v257 = vlaneseq
        %v258 = vshrl.u32 %v257, 7
        %v259 = vsub.s32 %v256, %v258
        %v260 = vrot.slane %v246, %v259
        %v261 = vcombine.high %v253, %v253
        %v262 = vcombine.high %v260, %v260
        %v264 = vunpack.c.l.s4 1966171168
        %v265 = vunpack.c.0.s8 %v264
        %v266 = vlaneseq
        %v267 = vshrl.u32 %v266, 7
        %v268 = vsub.s32 %v265, %v267
        %v269 = vrot.slane %v253, %v268
        %v271 = vunpack.c.l.s4 1966171168
        %v272 = vunpack.c.0.s8 %v271
        %v273 = vlaneseq
        %v274 = vshrl.u32 %v273, 7
        %v275 = vsub.s32 %v272, %v274
        %v276 = vrot.slane %v260, %v275
        %v278 = vunpack.c.l.s4 1966171168
        %v279 = vunpack.c.0.s8 %v278
        %v280 = vlaneseq
        %v281 = vshrl.u32 %v280, 7
        %v282 = vsub.s32 %v279, %v281
        %v283 = vrot.slane %v261, %v282
        %v285 = vunpack.c.l.s4 1966171168
        %v286 = vunpack.c.0.s8 %v285
        %v287 = vlaneseq
        %v288 = vshrl.u32 %v287, 7
        %v289 = vsub.s32 %v286, %v288
        %v290 = vrot.slane %v262, %v289
        %v291 = vcombine.high %v269, %v269
        %v292 = vcombine.high %v276, %v276
        %v293 = vcombine.high %v283, %v283
        %v294 = vcombine.high %v290, %v290
        %vm303 = vcmask 57344
        %304 = vst.msk [vmem:[%s211] sm:$0x1] %vm303, %v269
        %305 = vst.msk [vmem:[%s211 + $0x8] sm:$0x1] %vm303, %v283
        %306 = vst.msk [vmem:[%s211 + $0x10] sm:$0x1] %vm303, %v291
        %307 = vst.msk [vmem:[%s211 + $0x18] sm:$0x1] %vm303, %v293
        %308 = vst.msk [vmem:[%s211 + $0x20] sm:$0x1] %vm303, %v276
        %309 = vst.msk [vmem:[%s211 + $0x28] sm:$0x1] %vm303, %v290
        %310 = vst.msk [vmem:[%s211 + $0x30] sm:$0x1] %vm303, %v292
        %311 = vst.msk [vmem:[%s211 + $0x38] sm:$0x1] %vm303, %v294
        %v312 = vlaneseq
        %v313 = vshrl.u32 %v312, 7
        %v314 = vsub.s32 0, %v313
        %v315 = vrot.slane %v269, %v314
        %v316 = vlaneseq
        %v317 = vshrl.u32 %v316, 7
        %v318 = vsub.s32 0, %v317
        %v319 = vrot.slane %v283, %v318
        %v320 = vlaneseq
        %v321 = vshrl.u32 %v320, 7
        %v322 = vsub.s32 0, %v321
        %v323 = vrot.slane %v291, %v322
        %v324 = vlaneseq
        %v325 = vshrl.u32 %v324, 7
        %v326 = vsub.s32 0, %v325
        %v327 = vrot.slane %v293, %v326
        %v328 = vlaneseq
        %v329 = vshrl.u32 %v328, 7
        %v330 = vsub.s32 0, %v329
        %v331 = vrot.slane %v276, %v330
        %v332 = vlaneseq
        %v333 = vshrl.u32 %v332, 7
        %v334 = vsub.s32 0, %v333
        %v335 = vrot.slane %v290, %v334
        %v336 = vlaneseq
        %v337 = vshrl.u32 %v336, 7
        %v338 = vsub.s32 0, %v337
        %v339 = vrot.slane %v292, %v338
        %v340 = vlaneseq
        %v341 = vshrl.u32 %v340, 7
        %v342 = vsub.s32 0, %v341
        %v343 = vrot.slane %v294, %v342
        %344 = vrot.lane.b32.xlu0 %v315, 118
        %v345 = vpop.permute.xlu0 %344
        %346 = vrot.lane.b32.xlu0 %v319, 118
        %v347 = vpop.permute.xlu0 %346
        %348 = vrot.lane.b32.xlu0 %v323, 118
        %v349 = vpop.permute.xlu0 %348
        %350 = vrot.lane.b32.xlu0 %v327, 118
        %v351 = vpop.permute.xlu0 %350
        %352 = vrot.lane.b32.xlu0 %v331, 118
        %v353 = vpop.permute.xlu0 %352
        %354 = vrot.lane.b32.xlu0 %v335, 118
        %v355 = vpop.permute.xlu0 %354
        %356 = vrot.lane.b32.xlu0 %v339, 118
        %v357 = vpop.permute.xlu0 %356
        %358 = vrot.lane.b32.xlu0 %v343, 118
        %v359 = vpop.permute.xlu0 %358
        %368 = vst.msk [vmem:[%s211 + $0x1] sm:$0x1] %vm303, %v345
        %369 = vst.msk [vmem:[%s211 + $0x9] sm:$0x1] %vm303, %v347
        %370 = vst.msk [vmem:[%s211 + $0x11] sm:$0x1] %vm303, %v349
        %371 = vst.msk [vmem:[%s211 + $0x19] sm:$0x1] %vm303, %v351
        %372 = vst.msk [vmem:[%s211 + $0x21] sm:$0x1] %vm303, %v353
        %373 = vst.msk [vmem:[%s211 + $0x29] sm:$0x1] %vm303, %v355
        %374 = vst.msk [vmem:[%s211 + $0x31] sm:$0x1] %vm303, %v357
        %375 = vst.msk [vmem:[%s211 + $0x39] sm:$0x1] %vm303, %v359
        %376 = vrot.lane.b32.xlu0 %v315, 108
        %v377 = vpop.permute.xlu0 %376
        %378 = vrot.lane.b32.xlu0 %v319, 108
        %v379 = vpop.permute.xlu0 %378
        %380 = vrot.lane.b32.xlu0 %v323, 108
        %v381 = vpop.permute.xlu0 %380
        %382 = vrot.lane.b32.xlu0 %v327, 108
        %v383 = vpop.permute.xlu0 %382
        %384 = vrot.lane.b32.xlu0 %v331, 108
        %v385 = vpop.permute.xlu0 %384
        %386 = vrot.lane.b32.xlu0 %v335, 108
        %v387 = vpop.permute.xlu0 %386
        %388 = vrot.lane.b32.xlu0 %v339, 108
        %v389 = vpop.permute.xlu0 %388
        %390 = vrot.lane.b32.xlu0 %v343, 108
        %v391 = vpop.permute.xlu0 %390
        %400 = vst.msk [vmem:[%s211 + $0x2] sm:$0x1] %vm303, %v377
        %401 = vst.msk [vmem:[%s211 + $0xa] sm:$0x1] %vm303, %v379
        %402 = vst.msk [vmem:[%s211 + $0x12] sm:$0x1] %vm303, %v381
        %403 = vst.msk [vmem:[%s211 + $0x1a] sm:$0x1] %vm303, %v383
        %404 = vst.msk [vmem:[%s211 + $0x22] sm:$0x1] %vm303, %v385
        %405 = vst.msk [vmem:[%s211 + $0x2a] sm:$0x1] %vm303, %v387
        %406 = vst.msk [vmem:[%s211 + $0x32] sm:$0x1] %vm303, %v389
        %407 = vst.msk [vmem:[%s211 + $0x3a] sm:$0x1] %vm303, %v391
        %408 = vrot.lane.b32.xlu0 %v315, 98
        %v409 = vpop.permute.xlu0 %408
        %410 = vrot.lane.b32.xlu0 %v319, 98
        %v411 = vpop.permute.xlu0 %410
        %412 = vrot.lane.b32.xlu0 %v323, 98
        %v413 = vpop.permute.xlu0 %412
        %414 = vrot.lane.b32.xlu0 %v327, 98
        %v415 = vpop.permute.xlu0 %414
        %416 = vrot.lane.b32.xlu0 %v331, 98
        %v417 = vpop.permute.xlu0 %416
        %418 = vrot.lane.b32.xlu0 %v335, 98
        %v419 = vpop.permute.xlu0 %418
        %420 = vrot.lane.b32.xlu0 %v339, 98
        %v421 = vpop.permute.xlu0 %420
        %422 = vrot.lane.b32.xlu0 %v343, 98
        %v423 = vpop.permute.xlu0 %422
        %432 = vst.msk [vmem:[%s211 + $0x3] sm:$0x1] %vm303, %v409
        %433 = vst.msk [vmem:[%s211 + $0xb] sm:$0x1] %vm303, %v411
        %434 = vst.msk [vmem:[%s211 + $0x13] sm:$0x1] %vm303, %v413
        %435 = vst.msk [vmem:[%s211 + $0x1b] sm:$0x1] %vm303, %v415
        %436 = vst.msk [vmem:[%s211 + $0x23] sm:$0x1] %vm303, %v417
        %437 = vst.msk [vmem:[%s211 + $0x2b] sm:$0x1] %vm303, %v419
        %438 = vst.msk [vmem:[%s211 + $0x33] sm:$0x1] %vm303, %v421
        %439 = vst.msk [vmem:[%s211 + $0x3b] sm:$0x1] %vm303, %v423
        %440 = vrot.lane.b32.xlu0 %v315, 88
        %v441 = vpop.permute.xlu0 %440
        %442 = vrot.lane.b32.xlu0 %v319, 88
        %v443 = vpop.permute.xlu0 %442
        %444 = vrot.lane.b32.xlu0 %v323, 88
        %v445 = vpop.permute.xlu0 %444
        %446 = vrot.lane.b32.xlu0 %v327, 88
        %v447 = vpop.permute.xlu0 %446
        %448 = vrot.lane.b32.xlu0 %v331, 88
        %v449 = vpop.permute.xlu0 %448
        %450 = vrot.lane.b32.xlu0 %v335, 88
        %v451 = vpop.permute.xlu0 %450
        %452 = vrot.lane.b32.xlu0 %v339, 88
        %v453 = vpop.permute.xlu0 %452
        %454 = vrot.lane.b32.xlu0 %v343, 88
        %v455 = vpop.permute.xlu0 %454
        %464 = vst.msk [vmem:[%s211 + $0x4] sm:$0x1] %vm303, %v441
        %465 = vst.msk [vmem:[%s211 + $0xc] sm:$0x1] %vm303, %v443
        %466 = vst.msk [vmem:[%s211 + $0x14] sm:$0x1] %vm303, %v445
        %467 = vst.msk [vmem:[%s211 + $0x1c] sm:$0x1] %vm303, %v447
        %468 = vst.msk [vmem:[%s211 + $0x24] sm:$0x1] %vm303, %v449
        %469 = vst.msk [vmem:[%s211 + $0x2c] sm:$0x1] %vm303, %v451
        %470 = vst.msk [vmem:[%s211 + $0x34] sm:$0x1] %vm303, %v453
        %471 = vst.msk [vmem:[%s211 + $0x3c] sm:$0x1] %vm303, %v455
        %472 = vrot.lane.b32.xlu0 %v315, 78
        %v473 = vpop.permute.xlu0 %472
        %474 = vrot.lane.b32.xlu0 %v319, 78
        %v475 = vpop.permute.xlu0 %474
        %476 = vrot.lane.b32.xlu0 %v323, 78
        %v477 = vpop.permute.xlu0 %476
        %478 = vrot.lane.b32.xlu0 %v327, 78
        %v479 = vpop.permute.xlu0 %478
        %480 = vrot.lane.b32.xlu0 %v331, 78
        %v481 = vpop.permute.xlu0 %480
        %482 = vrot.lane.b32.xlu0 %v335, 78
        %v483 = vpop.permute.xlu0 %482
        %484 = vrot.lane.b32.xlu0 %v339, 78
        %v485 = vpop.permute.xlu0 %484
        %486 = vrot.lane.b32.xlu0 %v343, 78
        %v487 = vpop.permute.xlu0 %486
        %496 = vst.msk [vmem:[%s211 + $0x5] sm:$0x1] %vm303, %v473
        %497 = vst.msk [vmem:[%s211 + $0xd] sm:$0x1] %vm303, %v475
        %498 = vst.msk [vmem:[%s211 + $0x15] sm:$0x1] %vm303, %v477
        %499 = vst.msk [vmem:[%s211 + $0x1d] sm:$0x1] %vm303, %v479
        %500 = vst.msk [vmem:[%s211 + $0x25] sm:$0x1] %vm303, %v481
        %501 = vst.msk [vmem:[%s211 + $0x2d] sm:$0x1] %vm303, %v483
        %502 = vst.msk [vmem:[%s211 + $0x35] sm:$0x1] %vm303, %v485
        %503 = vst.msk [vmem:[%s211 + $0x3d] sm:$0x1] %vm303, %v487
        %504 = vrot.lane.b32.xlu0 %v315, 68
        %v505 = vpop.permute.xlu0 %504
        %506 = vrot.lane.b32.xlu0 %v319, 68
        %v507 = vpop.permute.xlu0 %506
        %508 = vrot.lane.b32.xlu0 %v323, 68
        %v509 = vpop.permute.xlu0 %508
        %510 = vrot.lane.b32.xlu0 %v327, 68
        %v511 = vpop.permute.xlu0 %510
        %512 = vrot.lane.b32.xlu0 %v331, 68
        %v513 = vpop.permute.xlu0 %512
        %514 = vrot.lane.b32.xlu0 %v335, 68
        %v515 = vpop.permute.xlu0 %514
        %516 = vrot.lane.b32.xlu0 %v339, 68
        %v517 = vpop.permute.xlu0 %516
        %518 = vrot.lane.b32.xlu0 %v343, 68
        %v519 = vpop.permute.xlu0 %518
        %528 = vst.msk [vmem:[%s211 + $0x6] sm:$0x1] %vm303, %v505
        %529 = vst.msk [vmem:[%s211 + $0xe] sm:$0x1] %vm303, %v507
        %530 = vst.msk [vmem:[%s211 + $0x16] sm:$0x1] %vm303, %v509
        %531 = vst.msk [vmem:[%s211 + $0x1e] sm:$0x1] %vm303, %v511
        %532 = vst.msk [vmem:[%s211 + $0x26] sm:$0x1] %vm303, %v513
        %533 = vst.msk [vmem:[%s211 + $0x2e] sm:$0x1] %vm303, %v515
        %534 = vst.msk [vmem:[%s211 + $0x36] sm:$0x1] %vm303, %v517
        %535 = vst.msk [vmem:[%s211 + $0x3e] sm:$0x1] %vm303, %v519
        %536 = vrot.lane.b32.xlu0 %v315, 58
        %v537 = vpop.permute.xlu0 %536
        %538 = vrot.lane.b32.xlu0 %v319, 58
        %v539 = vpop.permute.xlu0 %538
        %540 = vrot.lane.b32.xlu0 %v323, 58
        %v541 = vpop.permute.xlu0 %540
        %542 = vrot.lane.b32.xlu0 %v327, 58
        %v543 = vpop.permute.xlu0 %542
        %544 = vrot.lane.b32.xlu0 %v331, 58
        %v545 = vpop.permute.xlu0 %544
        %546 = vrot.lane.b32.xlu0 %v335, 58
        %v547 = vpop.permute.xlu0 %546
        %548 = vrot.lane.b32.xlu0 %v339, 58
        %v549 = vpop.permute.xlu0 %548
        %550 = vrot.lane.b32.xlu0 %v343, 58
        %v551 = vpop.permute.xlu0 %550
        %560 = vst.msk [vmem:[%s211 + $0x7] sm:$0x1] %vm303, %v537
        %561 = vst.msk [vmem:[%s211 + $0xf] sm:$0x1] %vm303, %v539
        %562 = vst.msk [vmem:[%s211 + $0x17] sm:$0x1] %vm303, %v541
        %563 = vst.msk [vmem:[%s211 + $0x1f] sm:$0x1] %vm303, %v543
        %564 = vst.msk [vmem:[%s211 + $0x27] sm:$0x1] %vm303, %v545
        %565 = vst.msk [vmem:[%s211 + $0x2f] sm:$0x1] %vm303, %v547
        %566 = vst.msk [vmem:[%s211 + $0x37] sm:$0x1] %vm303, %v549
        %567 = vst.msk [vmem:[%s211 + $0x3f] sm:$0x1] %vm303, %v551
        %s568 = sand.u32 %s119, 1
        %s569 = scalar_lea.sflag [#allocation3], %s568
        %s570 = sand.u32 %s119, 1
        %s571 = smul.addr %s570, 64
        %s572 = scalar_lea.vmem [#allocation2], %s571
        // Predicated region
        $region33: #{unet_upsample_forward.3} parent=31 // pred_check
          %p573 = pneg %p129
        $region34: #{unet_upsample_forward.3} parent=31 // pred_check_branch
          %575 = sbr.rel (%p573) target = $region36
        $region35: #{unet_upsample_forward.3} parent=31 // pred_region
          %s577 = ssub.s32 1024, 1024
          %578 = vsyncadd %s569, %s577
          %s579 = smul.addr %s21, 64
          %s580 = sadd.s32 %s22, %s579
          %s581 = smul.addr %s580, 128
          %s582 = scalar_lea.hbm %s3, %s581
          %s583 = sshll.u32 %s572, 4
          %s584 = int_to_ptr.vmem [resolvable:$true] %s583
          %589 = dma.vmem_to_hbm [thread:$0]  %s584, 1024, %s582, %s569, 128, 1024, 8
        $region36: #{unet_upsample_forward.3} parent=31 // pred_fallthru
          _
      $region32: #{unet_upsample_forward.3} parent=5 // pred_fallthru
        _
      %p590 = scmp.le.s32.totalorder 2, %s12
      // Predicated region
      $region37: #{unet_upsample_forward.3} parent=5 // pred_check
        %p591 = pneg %p590
      $region38: #{unet_upsample_forward.3} parent=5 // pred_check_branch
        %593 = sbr.rel (%p591) target = $region40
      $region39: #{unet_upsample_forward.3} parent=5 // pred_region
        %s594 = ssub.s32 %s12, 2
        // Predicated region
        $region41: #{unet_upsample_forward.3} parent=39 // pred_check
          %p595 = pneg %p135
        $region42: #{unet_upsample_forward.3} parent=39 // pred_check_branch
          %597 = sbr.rel (%p595) target = $region44
        $region43: #{unet_upsample_forward.3} parent=39 // pred_region
          %s598 = sand.u32 %s120, 1
          %s599 = scalar_lea.sflag [#allocation3], %s598
          %s600 = sand.u32 %s120, 1
          %s601 = smul.addr %s600, 64
          %s602 = scalar_lea.vmem [#allocation2], %s601
          %603 = dma.done %s599, 1024
        $region44: #{unet_upsample_forward.3} parent=39 // pred_fallthru
          _
      $region40: #{unet_upsample_forward.3} parent=5 // pred_fallthru
        _
    $region6: #{unet_upsample_forward.3} parent=1 // loop_footer
      %s16 = sadd.s32 1, %s12
    $region7: #{unet_upsample_forward.3} parent=1 // loop_footer_branch
      %11 = sbr.rel target = $region3
    $region8: #{unet_upsample_forward.3} parent=1 // loop_exit
      _
    %604 = vsyncpa [#allocation3], 1
    %s605 = scalar_lea.sflag [#allocation3], 1
    %606 = vsyncpa %s605, 1

</llo_original>
